<compile_context>
chip_gen: v6e
topology: v6e:2x2x1
jax: 0.10.0
libtpu: 0.0.40
codegen_flags: <defaults>
</compile_context>

<pallas_src>
import math

import jax
import jax.numpy as jnp
from jax.experimental import pallas as pl
from jax.experimental.pallas import tpu as pltpu


# ----------------------------- Pallas kernel -------------------------------

def _disc_kernel(x_ref,
                 w1_ref, b1_ref,
                 w2_ref, b2_ref,
                 w3_ref, b3_ref,
                 w4_ref, b4_ref,
                 o_ref):
    def lrelu(v):  # f32 VPU work only (v5e has no bf16 VPU/EUP)
        return jnp.where(v >= 0, v, 0.2 * v)

    # Stream f32, cast to bf16 on the VPU (halves input-side HBM traffic vs a
    # wrapper-side cast pass).
    x = x_ref[...].astype(jnp.bfloat16)                          # [tb, d_in]

    # NOTE: layer 1's K = d_in only half-fills the 256-deep MXU on v6e/v7x
    # when d_in < 256; prefer d_input_dim as a multiple of 256 if it is free.
    h = jnp.dot(x, w1_ref[...], preferred_element_type=jnp.float32)
    h = lrelu(h + b1_ref[...])                                   # f32 [tb, 1024]

    h = jnp.dot(h.astype(jnp.bfloat16), w2_ref[...],
                preferred_element_type=jnp.float32)
    h = lrelu(h + b2_ref[...])                                   # f32 [tb, 512]

    h = jnp.dot(h.astype(jnp.bfloat16), w3_ref[...],
                preferred_element_type=jnp.float32)
    h = lrelu(h + b3_ref[...])                                   # f32 [tb, 256]

    # Final layer (out_features == 1): VPU multiply + XLU lane-reduce instead
    # of burning an MXU pass for a single output column.  w4 is a (1, 256) row
    # so the multiply is a plain sublane broadcast.
    w4 = w4_ref[...].astype(jnp.float32)                         # f32 [1, 256]
    z = jnp.sum(h * w4, axis=-1) + b4_ref[0]                     # f32 [tb]
    y = 1.0 / (1.0 + jnp.exp(-z))                                # sigmoid (EUP exp)

    o_ref[0, :] = y                                              # lane-dense row


def _round_up(x, m):
    return ((x + m - 1) // m) * m


def discriminator_forward(x, params, *, tile_b=512):
    """x: [B, d_input_dim] float32; params from init_discriminator_params."""
    assert tile_b % 128 == 0, "tile_b must be a multiple of 128 (lane width)"
    B, d_in = x.shape
    w1, b1 = params["w1"], params["b1"]
    w2, b2 = params["w2"], params["b2"]
    w3, b3 = params["w3"], params["b3"]
    w4, b4 = params["w4"], params["b4"]

    # Batch tiling:
    #   - pad batch to the f32 sublane multiple (8);
    #   - >= 2 lane-aligned tiles whenever the batch is big enough, so the
    #     "parallel" axis can shard across v7x's two TensorCores;
    #   - otherwise a single tile equal to the (padded) batch.
    pb = _round_up(B, 8)
    if pb > tile_b:
        tb = tile_b                                   # multiple of 128
    elif pb > 256:
        tb = _round_up(pl.cdiv(pb, 2), 128)           # split into >= 2 tiles
    else:
        tb = pb                                       # single small tile
    pb = _round_up(pb, tb)
    if pb != B:
        x = jnp.pad(x, ((0, pb - B), (0, 0)))

    def resident(a):  # whole array, VMEM-resident across all batch tiles
        return pl.BlockSpec(a.shape, lambda i, nd=a.ndim: (0,) * nd)

    flops = 2 * pb * (d_in * 1024 + 1024 * 512 + 512 * 256 + 256)
    bytes_accessed = ((w1.size + w2.size + w3.size + w4.size) * 2   # bf16 weights
                      + (b1.size + b2.size + b3.size + b4.size) * 4  # f32 biases
                      + pb * d_in * 4                                # f32 input
                      + pb * 4)                                      # f32 output row
    cost = pl.CostEstimate(flops=flops, transcendentals=pb,
                           bytes_accessed=bytes_accessed)

    out = pl.pallas_call(
        _disc_kernel,
        out_shape=jax.ShapeDtypeStruct((1, pb), jnp.float32),
        grid=(pb // tb,),
        in_specs=[
            pl.BlockSpec((tb, d_in), lambda i: (i, 0)),          # x: batch-tiled
            resident(w1), resident(b1),
            resident(w2), resident(b2),
            resident(w3), resident(b3),
            resident(w4),
            pl.BlockSpec(memory_space=pltpu.MemorySpace.SMEM),   # b4 scalar
        ],
        out_specs=pl.BlockSpec((1, tb), lambda i: (0, i)),       # lane-dense row
        compiler_params=pltpu.CompilerParams(
            dimension_semantics=("parallel",),
            vmem_limit_bytes=32 << 20,
        ),
        cost_estimate=cost,
    )(x, w1, b1, w2, b2, w3, b3, w4, b4)

    return out[0, :B].reshape(B, 1)


# ----------------------- parameter setup (plain JAX) -----------------------

def _xavier_uniform(key, shape, gain):
    # shape = (out_features, in_features), PyTorch convention
    fan_out, fan_in = shape
    a = gain * math.sqrt(6.0 / (fan_in + fan_out))
    return jax.random.uniform(key, shape, jnp.float32, minval=-a, maxval=a)


def _spectral_normalize(w, key, n_iter=1, eps=1e-12):
    """PyTorch spectral_norm: one power iteration, W / sigma.  w: [out, in]."""
    out_f, _ = w.shape
    u = jax.random.normal(key, (out_f,), jnp.float32)
    u = u / (jnp.linalg.norm(u) + eps)
    v = None
    for _ in range(n_iter):
        v = w.T @ u
        v = v / (jnp.linalg.norm(v) + eps)
        u = w @ v
        u = u / (jnp.linalg.norm(u) + eps)
    sigma = u @ (w @ v)
    return w / sigma


def init_discriminator_params(key, d_input_dim):
    # TODO(synk): PyTorch's spectral_norm persists the power-iteration vector u
    # across steps; here it is a one-shot preprocessing pass (matches a single
    # forward with a freshly initialized u).
    dims = [(1024, d_input_dim), (512, 1024), (256, 512), (1, 256)]
    gain_lrelu = math.sqrt(2.0 / (1.0 + 0.2 ** 2))   # calculate_gain('leaky_relu', 0.2)
    gains = [gain_lrelu, gain_lrelu, gain_lrelu, 1.0]  # fc4: calculate_gain('sigmoid')

    params = {}
    keys = jax.random.split(key, 8)
    for i, ((out_f, in_f), g) in enumerate(zip(dims, gains), start=1):
        w_pt = _xavier_uniform(keys[2 * (i - 1)], (out_f, in_f), g)   # [out, in]
        w_sn = _spectral_normalize(w_pt, keys[2 * (i - 1) + 1])
        if out_f == 1:
            # Last layer kept as a (1, 256) bf16 ROW: lane-wise broadcast in
            # the kernel's final reduce (no transpose / odd layout).
            params[f"w{i}"] = jnp.asarray(w_sn, jnp.bfloat16)          # [1, 256]
            params[f"b{i}"] = jnp.zeros((1,), jnp.float32)             # SMEM scalar
        else:
            params[f"w{i}"] = jnp.asarray(w_sn.T, jnp.bfloat16)        # [in, out]
            params[f"b{i}"] = jnp.zeros((1, out_f), jnp.float32)
    return params


# -------------------------- pure-JAX reference -----------------------------

def discriminator_ref(x, params):
    """Mirrors the kernel's precision: bf16 matmul inputs, f32 accumulation."""
    def lrelu(v):
        return jnp.where(v >= 0, v, 0.2 * v)

    h = lrelu(jnp.dot(x.astype(jnp.bfloat16), params["w1"],
                      preferred_element_type=jnp.float32) + params["b1"])
    h = lrelu(jnp.dot(h.astype(jnp.bfloat16), params["w2"],
                      preferred_element_type=jnp.float32) + params["b2"])
    h = lrelu(jnp.dot(h.astype(jnp.bfloat16), params["w3"],
                      preferred_element_type=jnp.float32) + params["b3"])
    w4 = params["w4"].astype(jnp.float32)                        # [1, 256]
    z = jnp.sum(h * w4, axis=-1, keepdims=True) + params["b4"][0]
    return jax.nn.sigmoid(z)


# --------------------------------- main -------------------------------------

if __name__ == "__main__":
    key = jax.random.PRNGKey(0)
    k_x, k_p = jax.random.split(key)

    B, D_IN = 8, 128
    x = jax.random.normal(k_x, (B, D_IN), jnp.float32)
    params = init_discriminator_params(k_p, D_IN)

    out = discriminator_forward(x, params)
    out = jax.block_until_ready(out)

    ref = discriminator_ref(x, params)
    assert out.shape == (B, 1), out.shape
    assert jnp.allclose(out, ref, atol=2e-3, rtol=2e-3), (
        float(jnp.max(jnp.abs(out - ref))))

    print("KERNEL_OK")
</pallas_src>

<mosaic_0001>
module attributes {stable_mosaic.version = 11 : i64} {
  func.func @_disc_kernel(%arg0: i32, %arg1: memref<8x128xf32, #tpu.memory_space<vmem>>, %arg2: memref<128x1024xbf16, #tpu.memory_space<vmem>>, %arg3: memref<1x1024xf32, #tpu.memory_space<vmem>>, %arg4: memref<1024x512xbf16, #tpu.memory_space<vmem>>, %arg5: memref<1x512xf32, #tpu.memory_space<vmem>>, %arg6: memref<512x256xbf16, #tpu.memory_space<vmem>>, %arg7: memref<1x256xf32, #tpu.memory_space<vmem>>, %arg8: memref<1x256xbf16, #tpu.memory_space<vmem>>, %arg9: memref<1xf32, #tpu.memory_space<smem>>, %arg10: memref<1x8xf32, #tpu.memory_space<vmem>>) attributes {dimension_semantics = [#tpu.dimension_semantics<parallel>], iteration_bounds = array<i64: 1>, scalar_prefetch = 0 : i64, scratch_operands = 0 : i64, tpu.core_type = #tpu.core_type<tc>, window_params = [{transform_indices = @transform_0, window_bounds = array<i64: 8, 128>}, {pipeline_mode = #tpu.pipeline_mode<synchronous>, transform_indices = @transform_1, window_bounds = array<i64: 128, 1024>}, {pipeline_mode = #tpu.pipeline_mode<synchronous>, transform_indices = @transform_2, window_bounds = array<i64: 1, 1024>}, {pipeline_mode = #tpu.pipeline_mode<synchronous>, transform_indices = @transform_3, window_bounds = array<i64: 1024, 512>}, {pipeline_mode = #tpu.pipeline_mode<synchronous>, transform_indices = @transform_4, window_bounds = array<i64: 1, 512>}, {pipeline_mode = #tpu.pipeline_mode<synchronous>, transform_indices = @transform_5, window_bounds = array<i64: 512, 256>}, {pipeline_mode = #tpu.pipeline_mode<synchronous>, transform_indices = @transform_6, window_bounds = array<i64: 1, 256>}, {pipeline_mode = #tpu.pipeline_mode<synchronous>, transform_indices = @transform_7, window_bounds = array<i64: 1, 256>}, {transform_indices = @transform_8, window_bounds = array<i64: 1>}, {transform_indices = @transform_9, window_bounds = array<i64: 1, 8>}]} {
    %c0 = arith.constant 0 : index
    %c0_0 = arith.constant 0 : index
    %0 = vector.load %arg1[%c0, %c0_0] : memref<8x128xf32, #tpu.memory_space<vmem>>, vector<8x128xf32>
    %1 = arith.truncf %0 : vector<8x128xf32> to vector<8x128xbf16>
    %c0_1 = arith.constant 0 : index
    %c0_2 = arith.constant 0 : index
    %2 = vector.load %arg2[%c0_1, %c0_2] : memref<128x1024xbf16, #tpu.memory_space<vmem>>, vector<128x1024xbf16>
    %cst = arith.constant dense<0.000000e+00> : vector<8x1024xf32>
    %3 = tpu.matmul %1, %2, %cst {dimension_numbers = #tpu.dot_dimension_numbers<[1], [0], [0], [1], [0, 0, 1, 1], [], []>} : vector<8x128xbf16>, vector<128x1024xbf16>, vector<8x1024xf32> -> vector<8x1024xf32>
    %c0_3 = arith.constant 0 : index
    %c0_4 = arith.constant 0 : index
    %4 = vector.load %arg3[%c0_3, %c0_4] : memref<1x1024xf32, #tpu.memory_space<vmem>>, vector<1x1024xf32>
    %5 = vector.broadcast %4 : vector<1x1024xf32> to vector<8x1024xf32>
    %6 = arith.addf %3, %5 : vector<8x1024xf32>
    %cst_5 = arith.constant 0.000000e+00 : f32
    %7 = vector.broadcast %cst_5 : f32 to vector<8x1024xf32>
    %8 = arith.cmpf oge, %6, %7 : vector<8x1024xf32>
    %cst_6 = arith.constant 2.000000e-01 : f32
    %9 = vector.broadcast %cst_6 : f32 to vector<8x1024xf32>
    %10 = arith.mulf %9, %6 : vector<8x1024xf32>
    %11 = arith.select %8, %6, %10 : vector<8x1024xi1>, vector<8x1024xf32>
    %12 = arith.truncf %11 : vector<8x1024xf32> to vector<8x1024xbf16>
    %c0_7 = arith.constant 0 : index
    %c0_8 = arith.constant 0 : index
    %13 = vector.load %arg4[%c0_7, %c0_8] : memref<1024x512xbf16, #tpu.memory_space<vmem>>, vector<1024x512xbf16>
    %cst_9 = arith.constant dense<0.000000e+00> : vector<8x512xf32>
    %14 = tpu.matmul %12, %13, %cst_9 {dimension_numbers = #tpu.dot_dimension_numbers<[1], [0], [0], [1], [0, 0, 1, 1], [], []>} : vector<8x1024xbf16>, vector<1024x512xbf16>, vector<8x512xf32> -> vector<8x512xf32>
    %c0_10 = arith.constant 0 : index
    %c0_11 = arith.constant 0 : index
    %15 = vector.load %arg5[%c0_10, %c0_11] : memref<1x512xf32, #tpu.memory_space<vmem>>, vector<1x512xf32>
    %16 = vector.broadcast %15 : vector<1x512xf32> to vector<8x512xf32>
    %17 = arith.addf %14, %16 : vector<8x512xf32>
    %cst_12 = arith.constant 0.000000e+00 : f32
    %18 = vector.broadcast %cst_12 : f32 to vector<8x512xf32>
    %19 = arith.cmpf oge, %17, %18 : vector<8x512xf32>
    %cst_13 = arith.constant 2.000000e-01 : f32
    %20 = vector.broadcast %cst_13 : f32 to vector<8x512xf32>
    %21 = arith.mulf %20, %17 : vector<8x512xf32>
    %22 = arith.select %19, %17, %21 : vector<8x512xi1>, vector<8x512xf32>
    %23 = arith.truncf %22 : vector<8x512xf32> to vector<8x512xbf16>
    %c0_14 = arith.constant 0 : index
    %c0_15 = arith.constant 0 : index
    %24 = vector.load %arg6[%c0_14, %c0_15] : memref<512x256xbf16, #tpu.memory_space<vmem>>, vector<512x256xbf16>
    %cst_16 = arith.constant dense<0.000000e+00> : vector<8x256xf32>
    %25 = tpu.matmul %23, %24, %cst_16 {dimension_numbers = #tpu.dot_dimension_numbers<[1], [0], [0], [1], [0, 0, 1, 1], [], []>} : vector<8x512xbf16>, vector<512x256xbf16>, vector<8x256xf32> -> vector<8x256xf32>
    %c0_17 = arith.constant 0 : index
    %c0_18 = arith.constant 0 : index
    %26 = vector.load %arg7[%c0_17, %c0_18] : memref<1x256xf32, #tpu.memory_space<vmem>>, vector<1x256xf32>
    %27 = vector.broadcast %26 : vector<1x256xf32> to vector<8x256xf32>
    %28 = arith.addf %25, %27 : vector<8x256xf32>
    %cst_19 = arith.constant 0.000000e+00 : f32
    %29 = vector.broadcast %cst_19 : f32 to vector<8x256xf32>
    %30 = arith.cmpf oge, %28, %29 : vector<8x256xf32>
    %cst_20 = arith.constant 2.000000e-01 : f32
    %31 = vector.broadcast %cst_20 : f32 to vector<8x256xf32>
    %32 = arith.mulf %31, %28 : vector<8x256xf32>
    %33 = arith.select %30, %28, %32 : vector<8x256xi1>, vector<8x256xf32>
    %c0_21 = arith.constant 0 : index
    %c0_22 = arith.constant 0 : index
    %34 = vector.load %arg8[%c0_21, %c0_22] : memref<1x256xbf16, #tpu.memory_space<vmem>>, vector<1x256xbf16>
    %35 = arith.extf %34 : vector<1x256xbf16> to vector<1x256xf32>
    %36 = vector.broadcast %35 : vector<1x256xf32> to vector<8x256xf32>
    %37 = arith.mulf %33, %36 : vector<8x256xf32>
    %cst_23 = arith.constant dense<0.000000e+00> : vector<8xf32>
    %38 = vector.multi_reduction <add>, %37, %cst_23 [1] : vector<8x256xf32> to vector<8xf32>
    %c0_24 = arith.constant 0 : index
    %39 = memref.load %arg9[%c0_24] : memref<1xf32, #tpu.memory_space<smem>>
    %40 = vector.broadcast %39 : f32 to vector<8xf32>
    %41 = arith.addf %38, %40 : vector<8xf32>
    %cst_25 = arith.constant 0.000000e+00 : f32
    %42 = vector.broadcast %cst_25 : f32 to vector<8xf32>
    %43 = arith.subf %42, %41 : vector<8xf32>
    %44 = math.exp %43 : vector<8xf32>
    %cst_26 = arith.constant 1.000000e+00 : f32
    %45 = vector.broadcast %cst_26 : f32 to vector<8xf32>
    %46 = arith.addf %45, %44 : vector<8xf32>
    %cst_27 = arith.constant 1.000000e+00 : f32
    %47 = vector.broadcast %cst_27 : f32 to vector<8xf32>
    %48 = arith.divf %47, %46 : vector<8xf32>
    %c0_28 = arith.constant 0 : index
    %c0_29 = arith.constant 0 : index
    %49 = vector.load %arg10[%c0_28, %c0_29] : memref<1x8xf32, #tpu.memory_space<vmem>>, vector<1x8xf32>
    %50 = vector.shape_cast %49 : vector<1x8xf32> to vector<8xf32>
    %51 = vector.shape_cast %48 : vector<8xf32> to vector<1x8xf32>
    tpu.vector_store %arg10[%c0_28, %c0_29], %51 {strides = array<i32>} : memref<1x8xf32, #tpu.memory_space<vmem>>, vector<1x8xf32>,
    return
  }
  func.func @transform_0(%arg0: i32) -> (i32, i32) {
    %c0_i32 = arith.constant 0 : i32
    %c0_i32_0 = arith.constant 0 : i32
    return %arg0, %c0_i32 : i32, i32
  }
  func.func @transform_1(%arg0: i32) -> (i32, i32) {
    %c0_i32 = arith.constant 0 : i32
    %c0_i32_0 = arith.constant 0 : i32
    %c0_i32_1 = arith.constant 0 : i32
    return %c0_i32, %c0_i32_0 : i32, i32
  }
  func.func @transform_2(%arg0: i32) -> (i32, i32) {
    %c0_i32 = arith.constant 0 : i32
    %c0_i32_0 = arith.constant 0 : i32
    %c0_i32_1 = arith.constant 0 : i32
    return %c0_i32, %c0_i32_0 : i32, i32
  }
  func.func @transform_3(%arg0: i32) -> (i32, i32) {
    %c0_i32 = arith.constant 0 : i32
    %c0_i32_0 = arith.constant 0 : i32
    %c0_i32_1 = arith.constant 0 : i32
    return %c0_i32, %c0_i32_0 : i32, i32
  }
  func.func @transform_4(%arg0: i32) -> (i32, i32) {
    %c0_i32 = arith.constant 0 : i32
    %c0_i32_0 = arith.constant 0 : i32
    %c0_i32_1 = arith.constant 0 : i32
    return %c0_i32, %c0_i32_0 : i32, i32
  }
  func.func @transform_5(%arg0: i32) -> (i32, i32) {
    %c0_i32 = arith.constant 0 : i32
    %c0_i32_0 = arith.constant 0 : i32
    %c0_i32_1 = arith.constant 0 : i32
    return %c0_i32, %c0_i32_0 : i32, i32
  }
  func.func @transform_6(%arg0: i32) -> (i32, i32) {
    %c0_i32 = arith.constant 0 : i32
    %c0_i32_0 = arith.constant 0 : i32
    %c0_i32_1 = arith.constant 0 : i32
    return %c0_i32, %c0_i32_0 : i32, i32
  }
  func.func @transform_7(%arg0: i32) -> (i32, i32) {
    %c0_i32 = arith.constant 0 : i32
    %c0_i32_0 = arith.constant 0 : i32
    %c0_i32_1 = arith.constant 0 : i32
    return %c0_i32, %c0_i32_0 : i32, i32
  }
  func.func @transform_8(%arg0: i32) -> i32 {
    %c0_i32 = arith.constant 0 : i32
    %c0_i32_0 = arith.constant 0 : i32
    return %c0_i32 : i32
  }
  func.func @transform_9(%arg0: i32) -> (i32, i32) {
    %c0_i32 = arith.constant 0 : i32
    %c0_i32_0 = arith.constant 0 : i32
    return %c0_i32, %arg0 : i32, i32
  }
}

</mosaic_0001>

<llo_original>
// kernel: tpu_custom_call.1
$region0: #{tpu_custom_call.1}
  #allocation0 [shape = 'u32[]', space=smem, size = 0x4, offset = 0x4, fixed_abs, tag = 'smem constant byte address 0x4 - core index']
  #allocation1 [shape = 'u32[144,128]{1,0:T(1,128)}', space=vmem, size = 0x12000, scoped, tag = 'internal scratch']
  #allocation2 [shape = 'f32[1]{0:T(128)S(6)}', space=smem, size = 0x200, scoped, tag = 'scoped memory for tpu_custom_call.1']
  %s0 = inlined_call_operand.hbm [shape: f32[8,128], index: 0, kind: input, shape index: {}]
  %s1 = inlined_call_operand.hbm [shape: bf16[128,1024], index: 1, kind: input, shape index: {}]
  %s2 = inlined_call_operand.hbm [shape: f32[1,1024], index: 2, kind: input, shape index: {}]
  %s3 = inlined_call_operand.hbm [shape: bf16[1024,512], index: 3, kind: input, shape index: {}]
  %s4 = inlined_call_operand.vmem [shape: f32[1,512], index: 4, kind: input, shape index: {}]
  %s5 = inlined_call_operand.hbm [shape: bf16[512,256], index: 5, kind: input, shape index: {}]
  %s6 = inlined_call_operand.vmem [shape: f32[1,256], index: 6, kind: input, shape index: {}]
  %s7 = inlined_call_operand.vmem [shape: bf16[1,256], index: 7, kind: input, shape index: {}]
  %s8 = inlined_call_operand.<no memory space> [shape: f32[1], index: 8, kind: input, shape index: {}]
  %s9 = inlined_call_operand.hbm [shape: f32[1,8], index: 9, kind: output, shape index: {}]
  %s10 = sld [smem:[#allocation0]]
  $region66: #{tpu_custom_call.1} parent=0
    _
  %s12 = ssub.s32 1, %s10
  %s13 = scalar_select 0, %s12, %s10
  %14 = sst [smem:[#allocation2]] %s8
  $region1: #{tpu_custom_call.1} parent=0
    #allocation3 [shape = 'u8[4096]{0}', space=vmem, size = 0x1000, scoped, tag = 'input window, operand 0, single buffered']
    #allocation4 [shape = 's32[1]{0}', space=sflag, size = 0x4, scoped, tag = 'scoped memory for tpu_custom_call.1']
    #allocation5 [shape = 's32[1]{0}', space=sflag, size = 0x4, scoped, tag = 'scoped memory for tpu_custom_call.1']
    #allocation6 [shape = 'u8[262144]{0}', space=vmem, size = 0x40000, scoped, tag = 'input window, operand 1, single buffered']
    #allocation7 [shape = 's32[1]{0}', space=sflag, size = 0x4, scoped, tag = 'scoped memory for tpu_custom_call.1']
    #allocation8 [shape = 'u8[4096]{0}', space=vmem, size = 0x1000, scoped, tag = 'input window, operand 2, single buffered']
    #allocation9 [shape = 'u8[1048576]{0}', space=vmem, size = 0x100000, scoped, tag = 'input window, operand 3, single buffered']
    #allocation10 [shape = 's32[1]{0}', space=sflag, size = 0x4, scoped, tag = 'scoped memory for tpu_custom_call.1']
    #allocation11 [shape = 'u8[262144]{0}', space=vmem, size = 0x40000, scoped, tag = 'input window, operand 5, single buffered']
    #allocation12 [shape = 'u8[512]{0}', space=vmem, size = 0x400, scoped, tag = 'output window, operand 0, single buffered']
    %15 = vsyncpa [#allocation4], 0
    %16 = vsyncpa [#allocation7], 0
    %17 = vsyncpa [#allocation10], 0
    %18 = vsyncpa [#allocation5], 0
    // Predicated region
    $region2: #{tpu_custom_call.1} parent=1 // pred_check
      _
    $region3: #{tpu_custom_call.1} parent=1 // pred_check_branch
      %20 = sbr.rel (0) target = $region5
    $region4: #{tpu_custom_call.1} parent=1 // pred_region
      %s22 = ssub.s32 128, 128
      %23 = vsyncadd [#allocation4], %s22
      %s25 = sshll.u32 [#allocation3], 4
      %s26 = int_to_ptr.vmem [resolvable:$true] %s25
      %28 = dma.hbm_to_vmem [thread:$0]  %s0, 128, %s26, [#allocation4]
    $region5: #{tpu_custom_call.1} parent=1 // pred_fallthru
      _
    // Predicated region
    $region6: #{tpu_custom_call.1} parent=1 // pred_check
      _
    $region7: #{tpu_custom_call.1} parent=1 // pred_check_branch
      %30 = sbr.rel (0) target = $region9
    $region8: #{tpu_custom_call.1} parent=1 // pred_region
      %s32 = ssub.s32 8192, 8192
      %33 = vsyncadd [#allocation7], %s32
      %s34 = sshll.u32 [#allocation6], 4
      %s35 = int_to_ptr.vmem [resolvable:$true] %s34
      %40 = dma.hbm_to_vmem [thread:$0]  %s1, 8192, %s35, [#allocation7], 512, 512, 32
    $region9: #{tpu_custom_call.1} parent=1 // pred_fallthru
      _
    // Predicated region
    $region10: #{tpu_custom_call.1} parent=1 // pred_check
      _
    $region11: #{tpu_custom_call.1} parent=1 // pred_check_branch
      %42 = sbr.rel (0) target = $region13
    $region12: #{tpu_custom_call.1} parent=1 // pred_region
      %s44 = ssub.s32 128, 128
      %45 = vsyncadd [#allocation7], %s44
      %s47 = sshll.u32 [#allocation8], 4
      %s48 = int_to_ptr.vmem [resolvable:$true] %s47
      %50 = dma.hbm_to_vmem [thread:$0]  %s2, 128, %s48, [#allocation7]
    $region13: #{tpu_custom_call.1} parent=1 // pred_fallthru
      _
    // Predicated region
    $region14: #{tpu_custom_call.1} parent=1 // pred_check
      _
    $region15: #{tpu_custom_call.1} parent=1 // pred_check_branch
      %52 = sbr.rel (0) target = $region17
    $region16: #{tpu_custom_call.1} parent=1 // pred_region
      %s54 = ssub.s32 32768, 32768
      %55 = vsyncadd [#allocation10], %s54
      %s56 = sshll.u32 [#allocation9], 4
      %s57 = int_to_ptr.vmem [resolvable:$true] %s56
      %62 = dma.hbm_to_vmem [thread:$0]  %s3, 32768, %s57, [#allocation10], 256, 256, 16
    $region17: #{tpu_custom_call.1} parent=1 // pred_fallthru
      _
    // Predicated region
    $region18: #{tpu_custom_call.1} parent=1 // pred_check
      _
    $region19: #{tpu_custom_call.1} parent=1 // pred_check_branch
      %64 = sbr.rel (0) target = $region21
    $region20: #{tpu_custom_call.1} parent=1 // pred_region
      _
    $region21: #{tpu_custom_call.1} parent=1 // pred_fallthru
      _
    // Predicated region
    $region22: #{tpu_custom_call.1} parent=1 // pred_check
      _
    $region23: #{tpu_custom_call.1} parent=1 // pred_check_branch
      %66 = sbr.rel (0) target = $region25
    $region24: #{tpu_custom_call.1} parent=1 // pred_region
      %s68 = ssub.s32 8192, 8192
      %69 = vsyncadd [#allocation10], %s68
      %s70 = sshll.u32 [#allocation11], 4
      %s71 = int_to_ptr.vmem [resolvable:$true] %s70
      %76 = dma.hbm_to_vmem [thread:$0]  %s5, 8192, %s71, [#allocation10], 128, 128, 8
    $region25: #{tpu_custom_call.1} parent=1 // pred_fallthru
      _
    // Predicated region
    $region26: #{tpu_custom_call.1} parent=1 // pred_check
      _
    $region27: #{tpu_custom_call.1} parent=1 // pred_check_branch
      %78 = sbr.rel (0) target = $region29
    $region28: #{tpu_custom_call.1} parent=1 // pred_region
      _
    $region29: #{tpu_custom_call.1} parent=1 // pred_fallthru
      _
    // Predicated region
    $region30: #{tpu_custom_call.1} parent=1 // pred_check
      _
    $region31: #{tpu_custom_call.1} parent=1 // pred_check_branch
      %80 = sbr.rel (0) target = $region33
    $region32: #{tpu_custom_call.1} parent=1 // pred_region
      _
    $region33: #{tpu_custom_call.1} parent=1 // pred_fallthru
      _
    // Predicated region
    $region34: #{tpu_custom_call.1} parent=1 // pred_check
      _
    $region35: #{tpu_custom_call.1} parent=1 // pred_check_branch
      %82 = sbr.rel (0) target = $region37
    $region36: #{tpu_custom_call.1} parent=1 // pred_region
      _
    $region37: #{tpu_custom_call.1} parent=1 // pred_fallthru
      _
    // Predicated region
    $region38: #{tpu_custom_call.1} parent=1 // pred_check
      _
    $region39: #{tpu_custom_call.1} parent=1 // pred_check_branch
      %84 = sbr.rel (0) target = $region41
    $region40: #{tpu_custom_call.1} parent=1 // pred_region
      %85 = dma.done [#allocation4], 128
    $region41: #{tpu_custom_call.1} parent=1 // pred_fallthru
      _
    // Predicated region
    $region42: #{tpu_custom_call.1} parent=1 // pred_check
      _
    $region43: #{tpu_custom_call.1} parent=1 // pred_check_branch
      %87 = sbr.rel (0) target = $region45
    $region44: #{tpu_custom_call.1} parent=1 // pred_region
      %88 = dma.done [#allocation7], 8192
    $region45: #{tpu_custom_call.1} parent=1 // pred_fallthru
      _
    // Predicated region
    $region46: #{tpu_custom_call.1} parent=1 // pred_check
      _
    $region47: #{tpu_custom_call.1} parent=1 // pred_check_branch
      %90 = sbr.rel (0) target = $region49
    $region48: #{tpu_custom_call.1} parent=1 // pred_region
      %91 = dma.done [#allocation7], 128
    $region49: #{tpu_custom_call.1} parent=1 // pred_fallthru
      _
    // Predicated region
    $region50: #{tpu_custom_call.1} parent=1 // pred_check
      _
    $region51: #{tpu_custom_call.1} parent=1 // pred_check_branch
      %93 = sbr.rel (0) target = $region53
    $region52: #{tpu_custom_call.1} parent=1 // pred_region
      %94 = dma.done [#allocation10], 32768
    $region53: #{tpu_custom_call.1} parent=1 // pred_fallthru
      _
    // Predicated region
    $region54: #{tpu_custom_call.1} parent=1 // pred_check
      _
    $region55: #{tpu_custom_call.1} parent=1 // pred_check_branch
      %96 = sbr.rel (0) target = $region57
    $region56: #{tpu_custom_call.1} parent=1 // pred_region
      %97 = dma.done [#allocation10], 8192
    $region57: #{tpu_custom_call.1} parent=1 // pred_fallthru
      _
    %v99 = vld [vmem:[#allocation3] sm:$0xff]
    %v100 = vpack.c.bf16 %v99, %v99
    %v101 = vld [vmem:[#allocation6] sm:$0xff]
    %v102 = vld [vmem:[#allocation6 + $0x8] sm:$0xff]
    %v103 = vld [vmem:[#allocation6 + $0x10] sm:$0xff]
    %v104 = vld [vmem:[#allocation6 + $0x18] sm:$0xff]
    %v105 = vld [vmem:[#allocation6 + $0x20] sm:$0xff]
    %v106 = vld [vmem:[#allocation6 + $0x28] sm:$0xff]
    %v107 = vld [vmem:[#allocation6 + $0x30] sm:$0xff]
    %v108 = vld [vmem:[#allocation6 + $0x38] sm:$0xff]
    %v109 = vld [vmem:[#allocation6 + $0x40] sm:$0xff]
    %v110 = vld [vmem:[#allocation6 + $0x48] sm:$0xff]
    %v111 = vld [vmem:[#allocation6 + $0x50] sm:$0xff]
    %v112 = vld [vmem:[#allocation6 + $0x58] sm:$0xff]
    %v113 = vld [vmem:[#allocation6 + $0x60] sm:$0xff]
    %v114 = vld [vmem:[#allocation6 + $0x68] sm:$0xff]
    %v115 = vld [vmem:[#allocation6 + $0x70] sm:$0xff]
    %v116 = vld [vmem:[#allocation6 + $0x78] sm:$0xff]
    %v117 = vld [vmem:[#allocation6 + $0x80] sm:$0xff]
    %v118 = vld [vmem:[#allocation6 + $0x88] sm:$0xff]
    %v119 = vld [vmem:[#allocation6 + $0x90] sm:$0xff]
    %v120 = vld [vmem:[#allocation6 + $0x98] sm:$0xff]
    %v121 = vld [vmem:[#allocation6 + $0xa0] sm:$0xff]
    %v122 = vld [vmem:[#allocation6 + $0xa8] sm:$0xff]
    %v123 = vld [vmem:[#allocation6 + $0xb0] sm:$0xff]
    %v124 = vld [vmem:[#allocation6 + $0xb8] sm:$0xff]
    %v125 = vld [vmem:[#allocation6 + $0xc0] sm:$0xff]
    %v126 = vld [vmem:[#allocation6 + $0xc8] sm:$0xff]
    %v127 = vld [vmem:[#allocation6 + $0xd0] sm:$0xff]
    %v128 = vld [vmem:[#allocation6 + $0xd8] sm:$0xff]
    %v129 = vld [vmem:[#allocation6 + $0xe0] sm:$0xff]
    %v130 = vld [vmem:[#allocation6 + $0xe8] sm:$0xff]
    %v131 = vld [vmem:[#allocation6 + $0xf0] sm:$0xff]
    %v132 = vld [vmem:[#allocation6 + $0xf8] sm:$0xff]
    %v133 = vld [vmem:[#allocation6 + $0x100] sm:$0xff]
    %v134 = vld [vmem:[#allocation6 + $0x108] sm:$0xff]
    %v135 = vld [vmem:[#allocation6 + $0x110] sm:$0xff]
    %v136 = vld [vmem:[#allocation6 + $0x118] sm:$0xff]
    %v137 = vld [vmem:[#allocation6 + $0x120] sm:$0xff]
    %v138 = vld [vmem:[#allocation6 + $0x128] sm:$0xff]
    %v139 = vld [vmem:[#allocation6 + $0x130] sm:$0xff]
    %v140 = vld [vmem:[#allocation6 + $0x138] sm:$0xff]
    %v141 = vld [vmem:[#allocation6 + $0x140] sm:$0xff]
    %v142 = vld [vmem:[#allocation6 + $0x148] sm:$0xff]
    %v143 = vld [vmem:[#allocation6 + $0x150] sm:$0xff]
    %v144 = vld [vmem:[#allocation6 + $0x158] sm:$0xff]
    %v145 = vld [vmem:[#allocation6 + $0x160] sm:$0xff]
    %v146 = vld [vmem:[#allocation6 + $0x168] sm:$0xff]
    %v147 = vld [vmem:[#allocation6 + $0x170] sm:$0xff]
    %v148 = vld [vmem:[#allocation6 + $0x178] sm:$0xff]
    %v149 = vld [vmem:[#allocation6 + $0x180] sm:$0xff]
    %v150 = vld [vmem:[#allocation6 + $0x188] sm:$0xff]
    %v151 = vld [vmem:[#allocation6 + $0x190] sm:$0xff]
    %v152 = vld [vmem:[#allocation6 + $0x198] sm:$0xff]
    %v153 = vld [vmem:[#allocation6 + $0x1a0] sm:$0xff]
    %v154 = vld [vmem:[#allocation6 + $0x1a8] sm:$0xff]
    %v155 = vld [vmem:[#allocation6 + $0x1b0] sm:$0xff]
    %v156 = vld [vmem:[#allocation6 + $0x1b8] sm:$0xff]
    %v157 = vld [vmem:[#allocation6 + $0x1c0] sm:$0xff]
    %v158 = vld [vmem:[#allocation6 + $0x1c8] sm:$0xff]
    %v159 = vld [vmem:[#allocation6 + $0x1d0] sm:$0xff]
    %v160 = vld [vmem:[#allocation6 + $0x1d8] sm:$0xff]
    %v161 = vld [vmem:[#allocation6 + $0x1e0] sm:$0xff]
    %v162 = vld [vmem:[#allocation6 + $0x1e8] sm:$0xff]
    %v163 = vld [vmem:[#allocation6 + $0x1f0] sm:$0xff]
    %v164 = vld [vmem:[#allocation6 + $0x1f8] sm:$0xff]
    %v165 = vld [vmem:[#allocation8] sm:$0xff]
    %v167 = vlaneseq
    %v168 = vshrl.u32 %v167, 7
    %v169 = vsub.s32 0, %v168
    %v170 = vrot.slane %v165, %v169
    %v171 = vlaneseq
    %v172 = vshrl.u32 %v171, 7
    %v173 = vsub.s32 1, %v172
    %v174 = vrot.slane %v165, %v173
    %v175 = vlaneseq
    %v176 = vshrl.u32 %v175, 7
    %v177 = vsub.s32 2, %v176
    %v178 = vrot.slane %v165, %v177
    %v179 = vlaneseq
    %v180 = vshrl.u32 %v179, 7
    %v181 = vsub.s32 3, %v180
    %v182 = vrot.slane %v165, %v181
    %v183 = vlaneseq
    %v184 = vshrl.u32 %v183, 7
    %v185 = vsub.s32 4, %v184
    %v186 = vrot.slane %v165, %v185
    %v187 = vlaneseq
    %v188 = vshrl.u32 %v187, 7
    %v189 = vsub.s32 5, %v188
    %v190 = vrot.slane %v165, %v189
    %v191 = vlaneseq
    %v192 = vshrl.u32 %v191, 7
    %v193 = vsub.s32 6, %v192
    %v194 = vrot.slane %v165, %v193
    %v195 = vlaneseq
    %v196 = vshrl.u32 %v195, 7
    %v197 = vsub.s32 7, %v196
    %v198 = vrot.slane %v165, %v197
    %v271 = vunpack.c.l.b16 %v101
    %v272 = vunpack.c.h.b16 %v101
    %v273 = vunpack.c.l.b16 %v102
    %v274 = vunpack.c.h.b16 %v102
    %v275 = vunpack.c.l.b16 %v103
    %v276 = vunpack.c.h.b16 %v103
    %v277 = vunpack.c.l.b16 %v104
    %v278 = vunpack.c.h.b16 %v104
    %v279 = vunpack.c.l.b16 %v105
    %v280 = vunpack.c.h.b16 %v105
    %v281 = vunpack.c.l.b16 %v106
    %v282 = vunpack.c.h.b16 %v106
    %v283 = vunpack.c.l.b16 %v107
    %v284 = vunpack.c.h.b16 %v107
    %v285 = vunpack.c.l.b16 %v108
    %v286 = vunpack.c.h.b16 %v108
    %v287 = vunpack.c.l.b16 %v109
    %v288 = vunpack.c.h.b16 %v109
    %v289 = vunpack.c.l.b16 %v110
    %v290 = vunpack.c.h.b16 %v110
    %v291 = vunpack.c.l.b16 %v111
    %v292 = vunpack.c.h.b16 %v111
    %v293 = vunpack.c.l.b16 %v112
    %v294 = vunpack.c.h.b16 %v112
    %v295 = vunpack.c.l.b16 %v113
    %v296 = vunpack.c.h.b16 %v113
    %v297 = vunpack.c.l.b16 %v114
    %v298 = vunpack.c.h.b16 %v114
    %v299 = vunpack.c.l.b16 %v115
    %v300 = vunpack.c.h.b16 %v115
    %v301 = vunpack.c.l.b16 %v116
    %v302 = vunpack.c.h.b16 %v116
    %v303 = vunpack.c.l.b16 %v117
    %v304 = vunpack.c.h.b16 %v117
    %v305 = vunpack.c.l.b16 %v118
    %v306 = vunpack.c.h.b16 %v118
    %v307 = vunpack.c.l.b16 %v119
    %v308 = vunpack.c.h.b16 %v119
    %v309 = vunpack.c.l.b16 %v120
    %v310 = vunpack.c.h.b16 %v120
    %v311 = vunpack.c.l.b16 %v121
    %v312 = vunpack.c.h.b16 %v121
    %v313 = vunpack.c.l.b16 %v122
    %v314 = vunpack.c.h.b16 %v122
    %v315 = vunpack.c.l.b16 %v123
    %v316 = vunpack.c.h.b16 %v123
    %v317 = vunpack.c.l.b16 %v124
    %v318 = vunpack.c.h.b16 %v124
    %v319 = vunpack.c.l.b16 %v125
    %v320 = vunpack.c.h.b16 %v125
    %v321 = vunpack.c.l.b16 %v126
    %v322 = vunpack.c.h.b16 %v126
    %v323 = vunpack.c.l.b16 %v127
    %v324 = vunpack.c.h.b16 %v127
    %v325 = vunpack.c.l.b16 %v128
    %v326 = vunpack.c.h.b16 %v128
    %v327 = vunpack.c.l.b16 %v129
    %v328 = vunpack.c.h.b16 %v129
    %v329 = vunpack.c.l.b16 %v130
    %v330 = vunpack.c.h.b16 %v130
    %v331 = vunpack.c.l.b16 %v131
    %v332 = vunpack.c.h.b16 %v131
    %v333 = vunpack.c.l.b16 %v132
    %v334 = vunpack.c.h.b16 %v132
    %v335 = vunpack.c.l.b16 %v133
    %v336 = vunpack.c.h.b16 %v133
    %v337 = vunpack.c.l.b16 %v134
    %v338 = vunpack.c.h.b16 %v134
    %v339 = vunpack.c.l.b16 %v135
    %v340 = vunpack.c.h.b16 %v135
    %v341 = vunpack.c.l.b16 %v136
    %v342 = vunpack.c.h.b16 %v136
    %v343 = vunpack.c.l.b16 %v137
    %v344 = vunpack.c.h.b16 %v137
    %v345 = vunpack.c.l.b16 %v138
    %v346 = vunpack.c.h.b16 %v138
    %v347 = vunpack.c.l.b16 %v139
    %v348 = vunpack.c.h.b16 %v139
    %v349 = vunpack.c.l.b16 %v140
    %v350 = vunpack.c.h.b16 %v140
    %v351 = vunpack.c.l.b16 %v141
    %v352 = vunpack.c.h.b16 %v141
    %v353 = vunpack.c.l.b16 %v142
    %v354 = vunpack.c.h.b16 %v142
    %v355 = vunpack.c.l.b16 %v143
    %v356 = vunpack.c.h.b16 %v143
    %v357 = vunpack.c.l.b16 %v144
    %v358 = vunpack.c.h.b16 %v144
    %v359 = vunpack.c.l.b16 %v145
    %v360 = vunpack.c.h.b16 %v145
    %v361 = vunpack.c.l.b16 %v146
    %v362 = vunpack.c.h.b16 %v146
    %v363 = vunpack.c.l.b16 %v147
    %v364 = vunpack.c.h.b16 %v147
    %v365 = vunpack.c.l.b16 %v148
    %v366 = vunpack.c.h.b16 %v148
    %v367 = vunpack.c.l.b16 %v149
    %v368 = vunpack.c.h.b16 %v149
    %v369 = vunpack.c.l.b16 %v150
    %v370 = vunpack.c.h.b16 %v150
    %v371 = vunpack.c.l.b16 %v151
    %v372 = vunpack.c.h.b16 %v151
    %v373 = vunpack.c.l.b16 %v152
    %v374 = vunpack.c.h.b16 %v152
    %v375 = vunpack.c.l.b16 %v153
    %v376 = vunpack.c.h.b16 %v153
    %v377 = vunpack.c.l.b16 %v154
    %v378 = vunpack.c.h.b16 %v154
    %v379 = vunpack.c.l.b16 %v155
    %v380 = vunpack.c.h.b16 %v155
    %v381 = vunpack.c.l.b16 %v156
    %v382 = vunpack.c.h.b16 %v156
    %v383 = vunpack.c.l.b16 %v157
    %v384 = vunpack.c.h.b16 %v157
    %v385 = vunpack.c.l.b16 %v158
    %v386 = vunpack.c.h.b16 %v158
    %v387 = vunpack.c.l.b16 %v159
    %v388 = vunpack.c.h.b16 %v159
    %v389 = vunpack.c.l.b16 %v160
    %v390 = vunpack.c.h.b16 %v160
    %v391 = vunpack.c.l.b16 %v161
    %v392 = vunpack.c.h.b16 %v161
    %v393 = vunpack.c.l.b16 %v162
    %v394 = vunpack.c.h.b16 %v162
    %v395 = vunpack.c.l.b16 %v163
    %v396 = vunpack.c.h.b16 %v163
    %v397 = vunpack.c.l.b16 %v164
    %v398 = vunpack.c.h.b16 %v164
    %v399 = vpack.c.b16 %v279, %v271
    %v400 = vpack.c.b16 %v280, %v272
    %v401 = vpack.c.b16 %v281, %v273
    %v402 = vpack.c.b16 %v282, %v274
    %v403 = vpack.c.b16 %v283, %v275
    %v404 = vpack.c.b16 %v284, %v276
    %v405 = vpack.c.b16 %v285, %v277
    %v406 = vpack.c.b16 %v286, %v278
    %v407 = vpack.c.b16 %v295, %v287
    %v408 = vpack.c.b16 %v296, %v288
    %v409 = vpack.c.b16 %v297, %v289
    %v410 = vpack.c.b16 %v298, %v290
    %v411 = vpack.c.b16 %v299, %v291
    %v412 = vpack.c.b16 %v300, %v292
    %v413 = vpack.c.b16 %v301, %v293
    %v414 = vpack.c.b16 %v302, %v294
    %v415 = vpack.c.b16 %v311, %v303
    %v416 = vpack.c.b16 %v312, %v304
    %v417 = vpack.c.b16 %v313, %v305
    %v418 = vpack.c.b16 %v314, %v306
    %v419 = vpack.c.b16 %v315, %v307
    %v420 = vpack.c.b16 %v316, %v308
    %v421 = vpack.c.b16 %v317, %v309
    %v422 = vpack.c.b16 %v318, %v310
    %v423 = vpack.c.b16 %v327, %v319
    %v424 = vpack.c.b16 %v328, %v320
    %v425 = vpack.c.b16 %v329, %v321
    %v426 = vpack.c.b16 %v330, %v322
    %v427 = vpack.c.b16 %v331, %v323
    %v428 = vpack.c.b16 %v332, %v324
    %v429 = vpack.c.b16 %v333, %v325
    %v430 = vpack.c.b16 %v334, %v326
    %v431 = vpack.c.b16 %v343, %v335
    %v432 = vpack.c.b16 %v344, %v336
    %v433 = vpack.c.b16 %v345, %v337
    %v434 = vpack.c.b16 %v346, %v338
    %v435 = vpack.c.b16 %v347, %v339
    %v436 = vpack.c.b16 %v348, %v340
    %v437 = vpack.c.b16 %v349, %v341
    %v438 = vpack.c.b16 %v350, %v342
    %v439 = vpack.c.b16 %v359, %v351
    %v440 = vpack.c.b16 %v360, %v352
    %v441 = vpack.c.b16 %v361, %v353
    %v442 = vpack.c.b16 %v362, %v354
    %v443 = vpack.c.b16 %v363, %v355
    %v444 = vpack.c.b16 %v364, %v356
    %v445 = vpack.c.b16 %v365, %v357
    %v446 = vpack.c.b16 %v366, %v358
    %v447 = vpack.c.b16 %v375, %v367
    %v448 = vpack.c.b16 %v376, %v368
    %v449 = vpack.c.b16 %v377, %v369
    %v450 = vpack.c.b16 %v378, %v370
    %v451 = vpack.c.b16 %v379, %v371
    %v452 = vpack.c.b16 %v380, %v372
    %v453 = vpack.c.b16 %v381, %v373
    %v454 = vpack.c.b16 %v382, %v374
    %v455 = vpack.c.b16 %v391, %v383
    %v456 = vpack.c.b16 %v392, %v384
    %v457 = vpack.c.b16 %v393, %v385
    %v458 = vpack.c.b16 %v394, %v386
    %v459 = vpack.c.b16 %v395, %v387
    %v460 = vpack.c.b16 %v396, %v388
    %v461 = vpack.c.b16 %v397, %v389
    %v462 = vpack.c.b16 %v398, %v390
    %527 = vmatprep.subr.bf16.mxu0 %v456
    %528 = vmatpush1.bf16.msra.mxu0 %v455
    %529 = vmatprep.subr.bf16.mxu0 %v448
    %530 = vmatpush1.bf16.msra.mxu0 %v447
    %531 = vmatprep.subr.bf16.mxu0 %v440
    %532 = vmatpush1.bf16.msra.mxu0 %v439
    %533 = vmatprep.subr.bf16.mxu0 %v432
    %534 = vmatpush1.bf16.msra.mxu0 %v431
    %535 = vmatprep.subr.bf16.mxu0 %v424
    %536 = vmatpush1.bf16.msra.mxu0 %v423
    %537 = vmatprep.subr.bf16.mxu0 %v416
    %538 = vmatpush1.bf16.msra.mxu0 %v415
    %539 = vmatprep.subr.bf16.mxu0 %v408
    %540 = vmatpush1.bf16.msra.mxu0 %v407
    %541 = vmatprep.subr.bf16.mxu0 %v400
    %542 = vmatpush1.bf16.msra.mxu0 %v399
    %543 = vmatprep.subr.bf16.mxu0 0
    %544 = vmatpush2.bf16.msra.mxu0 0
    %545 = vmatprep.subr.bf16.mxu0 0
    %546 = vmatpush2.bf16.msra.mxu0 0
    %547 = vmatprep.subr.bf16.mxu0 0
    %548 = vmatpush2.bf16.msra.mxu0 0
    %549 = vmatprep.subr.bf16.mxu0 0
    %550 = vmatpush2.bf16.msra.mxu0 0
    %551 = vmatprep.subr.bf16.mxu0 0
    %552 = vmatpush2.bf16.msra.mxu0 0
    %553 = vmatprep.subr.bf16.mxu0 0
    %554 = vmatpush2.bf16.msra.mxu0 0
    %555 = vmatprep.subr.bf16.mxu0 0
    %556 = vmatpush2.bf16.msra.mxu0 0
    %557 = vmatprep.subr.bf16.mxu0 0
    %558 = vmatpush2.bf16.msra.mxu0 0
    %559 = vmatprep.mubr.bf16.mxu0 0
    %560 = vmatmul.mubr.bf16.gmra.mxu0 %v100
    %v561 = vpop.f32.mrf.mxu0
    %v562 = vadd.f32 %v170, %v561
    %v563 = vpop.f32.mrf.mxu0
    %v564 = vadd.f32 %v174, %v563
    %v565 = vpop.f32.mrf.mxu0
    %v566 = vpop.f32.mrf.mxu0
    %567 = vdwg.mxu0
    %568 = vmatprep.subr.bf16.mxu0 %v458
    %569 = vmatpush1.bf16.msra.mxu0 %v457
    %570 = vmatprep.subr.bf16.mxu0 %v450
    %571 = vmatpush1.bf16.msra.mxu0 %v449
    %572 = vmatprep.subr.bf16.mxu0 %v442
    %573 = vmatpush1.bf16.msra.mxu0 %v441
    %574 = vmatprep.subr.bf16.mxu0 %v434
    %575 = vmatpush1.bf16.msra.mxu0 %v433
    %576 = vmatprep.subr.bf16.mxu0 %v426
    %577 = vmatpush1.bf16.msra.mxu0 %v425
    %578 = vmatprep.subr.bf16.mxu0 %v418
    %579 = vmatpush1.bf16.msra.mxu0 %v417
    %580 = vmatprep.subr.bf16.mxu0 %v410
    %581 = vmatpush1.bf16.msra.mxu0 %v409
    %582 = vmatprep.subr.bf16.mxu0 %v402
    %583 = vmatpush1.bf16.msra.mxu0 %v401
    %584 = vmatprep.subr.bf16.mxu0 0
    %585 = vmatpush2.bf16.msra.mxu0 0
    %586 = vmatprep.subr.bf16.mxu0 0
    %587 = vmatpush2.bf16.msra.mxu0 0
    %588 = vmatprep.subr.bf16.mxu0 0
    %589 = vmatpush2.bf16.msra.mxu0 0
    %590 = vmatprep.subr.bf16.mxu0 0
    %591 = vmatpush2.bf16.msra.mxu0 0
    %592 = vmatprep.subr.bf16.mxu0 0
    %593 = vmatpush2.bf16.msra.mxu0 0
    %594 = vmatprep.subr.bf16.mxu0 0
    %595 = vmatpush2.bf16.msra.mxu0 0
    %596 = vmatprep.subr.bf16.mxu0 0
    %597 = vmatpush2.bf16.msra.mxu0 0
    %598 = vmatprep.subr.bf16.mxu0 0
    %599 = vmatpush2.bf16.msra.mxu0 0
    %600 = vmatprep.mubr.bf16.mxu0 0
    %601 = vmatmul.mubr.bf16.gmra.mxu0 %v100
    %v602 = vpop.f32.mrf.mxu0
    %v603 = vadd.f32 %v178, %v602
    %v604 = vpop.f32.mrf.mxu0
    %v605 = vadd.f32 %v182, %v604
    %v606 = vpop.f32.mrf.mxu0
    %v607 = vpop.f32.mrf.mxu0
    %608 = vdwg.mxu0
    %609 = vmatprep.subr.bf16.mxu0 %v460
    %610 = vmatpush1.bf16.msra.mxu0 %v459
    %611 = vmatprep.subr.bf16.mxu0 %v452
    %612 = vmatpush1.bf16.msra.mxu0 %v451
    %613 = vmatprep.subr.bf16.mxu0 %v444
    %614 = vmatpush1.bf16.msra.mxu0 %v443
    %615 = vmatprep.subr.bf16.mxu0 %v436
    %616 = vmatpush1.bf16.msra.mxu0 %v435
    %617 = vmatprep.subr.bf16.mxu0 %v428
    %618 = vmatpush1.bf16.msra.mxu0 %v427
    %619 = vmatprep.subr.bf16.mxu0 %v420
    %620 = vmatpush1.bf16.msra.mxu0 %v419
    %621 = vmatprep.subr.bf16.mxu0 %v412
    %622 = vmatpush1.bf16.msra.mxu0 %v411
    %623 = vmatprep.subr.bf16.mxu0 %v404
    %624 = vmatpush1.bf16.msra.mxu0 %v403
    %625 = vmatprep.subr.bf16.mxu0 0
    %626 = vmatpush2.bf16.msra.mxu0 0
    %627 = vmatprep.subr.bf16.mxu0 0
    %628 = vmatpush2.bf16.msra.mxu0 0
    %629 = vmatprep.subr.bf16.mxu0 0
    %630 = vmatpush2.bf16.msra.mxu0 0
    %631 = vmatprep.subr.bf16.mxu0 0
    %632 = vmatpush2.bf16.msra.mxu0 0
    %633 = vmatprep.subr.bf16.mxu0 0
    %634 = vmatpush2.bf16.msra.mxu0 0
    %635 = vmatprep.subr.bf16.mxu0 0
    %636 = vmatpush2.bf16.msra.mxu0 0
    %637 = vmatprep.subr.bf16.mxu0 0
    %638 = vmatpush2.bf16.msra.mxu0 0
    %639 = vmatprep.subr.bf16.mxu0 0
    %640 = vmatpush2.bf16.msra.mxu0 0
    %641 = vmatprep.mubr.bf16.mxu0 0
    %642 = vmatmul.mubr.bf16.gmra.mxu0 %v100
    %v643 = vpop.f32.mrf.mxu0
    %v644 = vadd.f32 %v186, %v643
    %v645 = vpop.f32.mrf.mxu0
    %v646 = vadd.f32 %v190, %v645
    %v647 = vpop.f32.mrf.mxu0
    %v648 = vpop.f32.mrf.mxu0
    %649 = vdwg.mxu0
    %650 = vmatprep.subr.bf16.mxu0 %v462
    %651 = vmatpush1.bf16.msra.mxu0 %v461
    %652 = vmatprep.subr.bf16.mxu0 %v454
    %653 = vmatpush1.bf16.msra.mxu0 %v453
    %654 = vmatprep.subr.bf16.mxu0 %v446
    %655 = vmatpush1.bf16.msra.mxu0 %v445
    %656 = vmatprep.subr.bf16.mxu0 %v438
    %657 = vmatpush1.bf16.msra.mxu0 %v437
    %658 = vmatprep.subr.bf16.mxu0 %v430
    %659 = vmatpush1.bf16.msra.mxu0 %v429
    %660 = vmatprep.subr.bf16.mxu0 %v422
    %661 = vmatpush1.bf16.msra.mxu0 %v421
    %662 = vmatprep.subr.bf16.mxu0 %v414
    %663 = vmatpush1.bf16.msra.mxu0 %v413
    %664 = vmatprep.subr.bf16.mxu0 %v406
    %665 = vmatpush1.bf16.msra.mxu0 %v405
    %666 = vmatprep.subr.bf16.mxu0 0
    %667 = vmatpush2.bf16.msra.mxu0 0
    %668 = vmatprep.subr.bf16.mxu0 0
    %669 = vmatpush2.bf16.msra.mxu0 0
    %670 = vmatprep.subr.bf16.mxu0 0
    %671 = vmatpush2.bf16.msra.mxu0 0
    %672 = vmatprep.subr.bf16.mxu0 0
    %673 = vmatpush2.bf16.msra.mxu0 0
    %674 = vmatprep.subr.bf16.mxu0 0
    %675 = vmatpush2.bf16.msra.mxu0 0
    %676 = vmatprep.subr.bf16.mxu0 0
    %677 = vmatpush2.bf16.msra.mxu0 0
    %678 = vmatprep.subr.bf16.mxu0 0
    %679 = vmatpush2.bf16.msra.mxu0 0
    %680 = vmatprep.subr.bf16.mxu0 0
    %681 = vmatpush2.bf16.msra.mxu0 0
    %682 = vmatprep.mubr.bf16.mxu0 0
    %683 = vmatmul.mubr.bf16.gmra.mxu0 %v100
    %v684 = vpop.f32.mrf.mxu0
    %v685 = vadd.f32 %v194, %v684
    %v686 = vpop.f32.mrf.mxu0
    %v687 = vadd.f32 %v198, %v686
    %v688 = vpop.f32.mrf.mxu0
    %v689 = vpop.f32.mrf.mxu0
    %690 = vdwg.mxu0
    %vm691 = vcmp.ge.f32.partialorder %v562, 0.0
    %vm692 = vcmp.ge.f32.partialorder %v564, 0.0
    %vm693 = vcmp.ge.f32.partialorder %v603, 0.0
    %vm694 = vcmp.ge.f32.partialorder %v605, 0.0
    %vm695 = vcmp.ge.f32.partialorder %v644, 0.0
    %vm696 = vcmp.ge.f32.partialorder %v646, 0.0
    %vm697 = vcmp.ge.f32.partialorder %v685, 0.0
    %vm698 = vcmp.ge.f32.partialorder %v687, 0.0
    %v699 = vmul.f32 %v562, 0.2
    %v700 = vmul.f32 %v564, 0.2
    %v701 = vmul.f32 %v603, 0.2
    %v702 = vmul.f32 %v605, 0.2
    %v703 = vmul.f32 %v644, 0.2
    %v704 = vmul.f32 %v646, 0.2
    %v705 = vmul.f32 %v685, 0.2
    %v706 = vmul.f32 %v687, 0.2
    %v707 = vsel %vm691, %v562, %v699
    %v708 = vsel %vm692, %v564, %v700
    %v709 = vsel %vm693, %v603, %v701
    %v710 = vsel %vm694, %v605, %v702
    %v711 = vsel %vm695, %v644, %v703
    %v712 = vsel %vm696, %v646, %v704
    %v713 = vsel %vm697, %v685, %v705
    %v714 = vsel %vm698, %v687, %v706
    %v715 = vpack.c.bf16 %v707, %v707
    %v716 = vpack.c.bf16 %v708, %v708
    %v717 = vpack.c.bf16 %v709, %v709
    %v718 = vpack.c.bf16 %v710, %v710
    %v719 = vpack.c.bf16 %v711, %v711
    %v720 = vpack.c.bf16 %v712, %v712
    %v721 = vpack.c.bf16 %v713, %v713
    %v722 = vpack.c.bf16 %v714, %v714
    %v723 = vld [vmem:[#allocation9] sm:$0xff]
    %v724 = vld [vmem:[#allocation9 + $0x8] sm:$0xff]
    %v725 = vld [vmem:[#allocation9 + $0x10] sm:$0xff]
    %v726 = vld [vmem:[#allocation9 + $0x18] sm:$0xff]
    %v727 = vld [vmem:[#allocation9 + $0x20] sm:$0xff]
    %v728 = vld [vmem:[#allocation9 + $0x28] sm:$0xff]
    %v729 = vld [vmem:[#allocation9 + $0x30] sm:$0xff]
    %v730 = vld [vmem:[#allocation9 + $0x38] sm:$0xff]
    %v731 = vld [vmem:[#allocation9 + $0x40] sm:$0xff]
    %v732 = vld [vmem:[#allocation9 + $0x48] sm:$0xff]
    %v733 = vld [vmem:[#allocation9 + $0x50] sm:$0xff]
    %v734 = vld [vmem:[#allocation9 + $0x58] sm:$0xff]
    %v735 = vld [vmem:[#allocation9 + $0x60] sm:$0xff]
    %v736 = vld [vmem:[#allocation9 + $0x68] sm:$0xff]
    %v737 = vld [vmem:[#allocation9 + $0x70] sm:$0xff]
    %v738 = vld [vmem:[#allocation9 + $0x78] sm:$0xff]
    %v739 = vld [vmem:[#allocation9 + $0x80] sm:$0xff]
    %v740 = vld [vmem:[#allocation9 + $0x88] sm:$0xff]
    %v741 = vld [vmem:[#allocation9 + $0x90] sm:$0xff]
    %v742 = vld [vmem:[#allocation9 + $0x98] sm:$0xff]
    %v743 = vld [vmem:[#allocation9 + $0xa0] sm:$0xff]
    %v744 = vld [vmem:[#allocation9 + $0xa8] sm:$0xff]
    %v745 = vld [vmem:[#allocation9 + $0xb0] sm:$0xff]
    %v746 = vld [vmem:[#allocation9 + $0xb8] sm:$0xff]
    %v747 = vld [vmem:[#allocation9 + $0xc0] sm:$0xff]
    %v748 = vld [vmem:[#allocation9 + $0xc8] sm:$0xff]
    %v749 = vld [vmem:[#allocation9 + $0xd0] sm:$0xff]
    %v750 = vld [vmem:[#allocation9 + $0xd8] sm:$0xff]
    %v751 = vld [vmem:[#allocation9 + $0xe0] sm:$0xff]
    %v752 = vld [vmem:[#allocation9 + $0xe8] sm:$0xff]
    %v753 = vld [vmem:[#allocation9 + $0xf0] sm:$0xff]
    %v754 = vld [vmem:[#allocation9 + $0xf8] sm:$0xff]
    %v755 = vld [vmem:[#allocation9 + $0x100] sm:$0xff]
    %v756 = vld [vmem:[#allocation9 + $0x108] sm:$0xff]
    %v757 = vld [vmem:[#allocation9 + $0x110] sm:$0xff]
    %v758 = vld [vmem:[#allocation9 + $0x118] sm:$0xff]
    %v759 = vld [vmem:[#allocation9 + $0x120] sm:$0xff]
    %v760 = vld [vmem:[#allocation9 + $0x128] sm:$0xff]
    %v761 = vld [vmem:[#allocation9 + $0x130] sm:$0xff]
    %v762 = vld [vmem:[#allocation9 + $0x138] sm:$0xff]
    %v763 = vld [vmem:[#allocation9 + $0x140] sm:$0xff]
    %v764 = vld [vmem:[#allocation9 + $0x148] sm:$0xff]
    %v765 = vld [vmem:[#allocation9 + $0x150] sm:$0xff]
    %v766 = vld [vmem:[#allocation9 + $0x158] sm:$0xff]
    %v767 = vld [vmem:[#allocation9 + $0x160] sm:$0xff]
    %v768 = vld [vmem:[#allocation9 + $0x168] sm:$0xff]
    %v769 = vld [vmem:[#allocation9 + $0x170] sm:$0xff]
    %v770 = vld [vmem:[#allocation9 + $0x178] sm:$0xff]
    %v771 = vld [vmem:[#allocation9 + $0x180] sm:$0xff]
    %v772 = vld [vmem:[#allocation9 + $0x188] sm:$0xff]
    %v773 = vld [vmem:[#allocation9 + $0x190] sm:$0xff]
    %v774 = vld [vmem:[#allocation9 + $0x198] sm:$0xff]
    %v775 = vld [vmem:[#allocation9 + $0x1a0] sm:$0xff]
    %v776 = vld [vmem:[#allocation9 + $0x1a8] sm:$0xff]
    %v777 = vld [vmem:[#allocation9 + $0x1b0] sm:$0xff]
    %v778 = vld [vmem:[#allocation9 + $0x1b8] sm:$0xff]
    %v779 = vld [vmem:[#allocation9 + $0x1c0] sm:$0xff]
    %v780 = vld [vmem:[#allocation9 + $0x1c8] sm:$0xff]
    %v781 = vld [vmem:[#allocation9 + $0x1d0] sm:$0xff]
    %v782 = vld [vmem:[#allocation9 + $0x1d8] sm:$0xff]
    %v783 = vld [vmem:[#allocation9 + $0x1e0] sm:$0xff]
    %v784 = vld [vmem:[#allocation9 + $0x1e8] sm:$0xff]
    %v785 = vld [vmem:[#allocation9 + $0x1f0] sm:$0xff]
    %v786 = vld [vmem:[#allocation9 + $0x1f8] sm:$0xff]
    %v787 = vld [vmem:[#allocation9 + $0x200] sm:$0xff]
    %v788 = vld [vmem:[#allocation9 + $0x208] sm:$0xff]
    %v789 = vld [vmem:[#allocation9 + $0x210] sm:$0xff]
    %v790 = vld [vmem:[#allocation9 + $0x218] sm:$0xff]
    %v791 = vld [vmem:[#allocation9 + $0x220] sm:$0xff]
    %v792 = vld [vmem:[#allocation9 + $0x228] sm:$0xff]
    %v793 = vld [vmem:[#allocation9 + $0x230] sm:$0xff]
    %v794 = vld [vmem:[#allocation9 + $0x238] sm:$0xff]
    %v795 = vld [vmem:[#allocation9 + $0x240] sm:$0xff]
    %v796 = vld [vmem:[#allocation9 + $0x248] sm:$0xff]
    %v797 = vld [vmem:[#allocation9 + $0x250] sm:$0xff]
    %v798 = vld [vmem:[#allocation9 + $0x258] sm:$0xff]
    %v799 = vld [vmem:[#allocation9 + $0x260] sm:$0xff]
    %v800 = vld [vmem:[#allocation9 + $0x268] sm:$0xff]
    %v801 = vld [vmem:[#allocation9 + $0x270] sm:$0xff]
    %v802 = vld [vmem:[#allocation9 + $0x278] sm:$0xff]
    %v803 = vld [vmem:[#allocation9 + $0x280] sm:$0xff]
    %v804 = vld [vmem:[#allocation9 + $0x288] sm:$0xff]
    %v805 = vld [vmem:[#allocation9 + $0x290] sm:$0xff]
    %v806 = vld [vmem:[#allocation9 + $0x298] sm:$0xff]
    %v807 = vld [vmem:[#allocation9 + $0x2a0] sm:$0xff]
    %v808 = vld [vmem:[#allocation9 + $0x2a8] sm:$0xff]
    %v809 = vld [vmem:[#allocation9 + $0x2b0] sm:$0xff]
    %v810 = vld [vmem:[#allocation9 + $0x2b8] sm:$0xff]
    %v811 = vld [vmem:[#allocation9 + $0x2c0] sm:$0xff]
    %v812 = vld [vmem:[#allocation9 + $0x2c8] sm:$0xff]
    %v813 = vld [vmem:[#allocation9 + $0x2d0] sm:$0xff]
    %v814 = vld [vmem:[#allocation9 + $0x2d8] sm:$0xff]
    %v815 = vld [vmem:[#allocation9 + $0x2e0] sm:$0xff]
    %v816 = vld [vmem:[#allocation9 + $0x2e8] sm:$0xff]
    %v817 = vld [vmem:[#allocation9 + $0x2f0] sm:$0xff]
    %v818 = vld [vmem:[#allocation9 + $0x2f8] sm:$0xff]
    %v819 = vld [vmem:[#allocation9 + $0x300] sm:$0xff]
    %v820 = vld [vmem:[#allocation9 + $0x308] sm:$0xff]
    %v821 = vld [vmem:[#allocation9 + $0x310] sm:$0xff]
    %v822 = vld [vmem:[#allocation9 + $0x318] sm:$0xff]
    %v823 = vld [vmem:[#allocation9 + $0x320] sm:$0xff]
    %v824 = vld [vmem:[#allocation9 + $0x328] sm:$0xff]
    %v825 = vld [vmem:[#allocation9 + $0x330] sm:$0xff]
    %v826 = vld [vmem:[#allocation9 + $0x338] sm:$0xff]
    %v827 = vld [vmem:[#allocation9 + $0x340] sm:$0xff]
    %v828 = vld [vmem:[#allocation9 + $0x348] sm:$0xff]
    %v829 = vld [vmem:[#allocation9 + $0x350] sm:$0xff]
    %v830 = vld [vmem:[#allocation9 + $0x358] sm:$0xff]
    %v831 = vld [vmem:[#allocation9 + $0x360] sm:$0xff]
    %v832 = vld [vmem:[#allocation9 + $0x368] sm:$0xff]
    %v833 = vld [vmem:[#allocation9 + $0x370] sm:$0xff]
    %v834 = vld [vmem:[#allocation9 + $0x378] sm:$0xff]
    %v835 = vld [vmem:[#allocation9 + $0x380] sm:$0xff]
    %v836 = vld [vmem:[#allocation9 + $0x388] sm:$0xff]
    %v837 = vld [vmem:[#allocation9 + $0x390] sm:$0xff]
    %v838 = vld [vmem:[#allocation9 + $0x398] sm:$0xff]
    %v839 = vld [vmem:[#allocation9 + $0x3a0] sm:$0xff]
    %v840 = vld [vmem:[#allocation9 + $0x3a8] sm:$0xff]
    %v841 = vld [vmem:[#allocation9 + $0x3b0] sm:$0xff]
    %v842 = vld [vmem:[#allocation9 + $0x3b8] sm:$0xff]
    %v843 = vld [vmem:[#allocation9 + $0x3c0] sm:$0xff]
    %v844 = vld [vmem:[#allocation9 + $0x3c8] sm:$0xff]
    %v845 = vld [vmem:[#allocation9 + $0x3d0] sm:$0xff]
    %v846 = vld [vmem:[#allocation9 + $0x3d8] sm:$0xff]
    %v847 = vld [vmem:[#allocation9 + $0x3e0] sm:$0xff]
    %v848 = vld [vmem:[#allocation9 + $0x3e8] sm:$0xff]
    %v849 = vld [vmem:[#allocation9 + $0x3f0] sm:$0xff]
    %v850 = vld [vmem:[#allocation9 + $0x3f8] sm:$0xff]
    %v851 = vld [vmem:[#allocation9 + $0x400] sm:$0xff]
    %v852 = vld [vmem:[#allocation9 + $0x408] sm:$0xff]
    %v853 = vld [vmem:[#allocation9 + $0x410] sm:$0xff]
    %v854 = vld [vmem:[#allocation9 + $0x418] sm:$0xff]
    %v855 = vld [vmem:[#allocation9 + $0x420] sm:$0xff]
    %v856 = vld [vmem:[#allocation9 + $0x428] sm:$0xff]
    %v857 = vld [vmem:[#allocation9 + $0x430] sm:$0xff]
    %v858 = vld [vmem:[#allocation9 + $0x438] sm:$0xff]
    %v859 = vld [vmem:[#allocation9 + $0x440] sm:$0xff]
    %v860 = vld [vmem:[#allocation9 + $0x448] sm:$0xff]
    %v861 = vld [vmem:[#allocation9 + $0x450] sm:$0xff]
    %v862 = vld [vmem:[#allocation9 + $0x458] sm:$0xff]
    %v863 = vld [vmem:[#allocation9 + $0x460] sm:$0xff]
    %v864 = vld [vmem:[#allocation9 + $0x468] sm:$0xff]
    %v865 = vld [vmem:[#allocation9 + $0x470] sm:$0xff]
    %v866 = vld [vmem:[#allocation9 + $0x478] sm:$0xff]
    %v867 = vld [vmem:[#allocation9 + $0x480] sm:$0xff]
    %v868 = vld [vmem:[#allocation9 + $0x488] sm:$0xff]
    %v869 = vld [vmem:[#allocation9 + $0x490] sm:$0xff]
    %v870 = vld [vmem:[#allocation9 + $0x498] sm:$0xff]
    %v871 = vld [vmem:[#allocation9 + $0x4a0] sm:$0xff]
    %v872 = vld [vmem:[#allocation9 + $0x4a8] sm:$0xff]
    %v873 = vld [vmem:[#allocation9 + $0x4b0] sm:$0xff]
    %v874 = vld [vmem:[#allocation9 + $0x4b8] sm:$0xff]
    %v875 = vld [vmem:[#allocation9 + $0x4c0] sm:$0xff]
    %v876 = vld [vmem:[#allocation9 + $0x4c8] sm:$0xff]
    %v877 = vld [vmem:[#allocation9 + $0x4d0] sm:$0xff]
    %v878 = vld [vmem:[#allocation9 + $0x4d8] sm:$0xff]
    %v879 = vld [vmem:[#allocation9 + $0x4e0] sm:$0xff]
    %v880 = vld [vmem:[#allocation9 + $0x4e8] sm:$0xff]
    %v881 = vld [vmem:[#allocation9 + $0x4f0] sm:$0xff]
    %v882 = vld [vmem:[#allocation9 + $0x4f8] sm:$0xff]
    %v883 = vld [vmem:[#allocation9 + $0x500] sm:$0xff]
    %v884 = vld [vmem:[#allocation9 + $0x508] sm:$0xff]
    %v885 = vld [vmem:[#allocation9 + $0x510] sm:$0xff]
    %v886 = vld [vmem:[#allocation9 + $0x518] sm:$0xff]
    %v887 = vld [vmem:[#allocation9 + $0x520] sm:$0xff]
    %v888 = vld [vmem:[#allocation9 + $0x528] sm:$0xff]
    %v889 = vld [vmem:[#allocation9 + $0x530] sm:$0xff]
    %v890 = vld [vmem:[#allocation9 + $0x538] sm:$0xff]
    %v891 = vld [vmem:[#allocation9 + $0x540] sm:$0xff]
    %v892 = vld [vmem:[#allocation9 + $0x548] sm:$0xff]
    %v893 = vld [vmem:[#allocation9 + $0x550] sm:$0xff]
    %v894 = vld [vmem:[#allocation9 + $0x558] sm:$0xff]
    %v895 = vld [vmem:[#allocation9 + $0x560] sm:$0xff]
    %v896 = vld [vmem:[#allocation9 + $0x568] sm:$0xff]
    %v897 = vld [vmem:[#allocation9 + $0x570] sm:$0xff]
    %v898 = vld [vmem:[#allocation9 + $0x578] sm:$0xff]
    %v899 = vld [vmem:[#allocation9 + $0x580] sm:$0xff]
    %v900 = vld [vmem:[#allocation9 + $0x588] sm:$0xff]
    %v901 = vld [vmem:[#allocation9 + $0x590] sm:$0xff]
    %v902 = vld [vmem:[#allocation9 + $0x598] sm:$0xff]
    %v903 = vld [vmem:[#allocation9 + $0x5a0] sm:$0xff]
    %v904 = vld [vmem:[#allocation9 + $0x5a8] sm:$0xff]
    %v905 = vld [vmem:[#allocation9 + $0x5b0] sm:$0xff]
    %v906 = vld [vmem:[#allocation9 + $0x5b8] sm:$0xff]
    %v907 = vld [vmem:[#allocation9 + $0x5c0] sm:$0xff]
    %v908 = vld [vmem:[#allocation9 + $0x5c8] sm:$0xff]
    %v909 = vld [vmem:[#allocation9 + $0x5d0] sm:$0xff]
    %v910 = vld [vmem:[#allocation9 + $0x5d8] sm:$0xff]
    %v911 = vld [vmem:[#allocation9 + $0x5e0] sm:$0xff]
    %v912 = vld [vmem:[#allocation9 + $0x5e8] sm:$0xff]
    %v913 = vld [vmem:[#allocation9 + $0x5f0] sm:$0xff]
    %v914 = vld [vmem:[#allocation9 + $0x5f8] sm:$0xff]
    %v915 = vld [vmem:[#allocation9 + $0x600] sm:$0xff]
    %v916 = vld [vmem:[#allocation9 + $0x608] sm:$0xff]
    %v917 = vld [vmem:[#allocation9 + $0x610] sm:$0xff]
    %v918 = vld [vmem:[#allocation9 + $0x618] sm:$0xff]
    %v919 = vld [vmem:[#allocation9 + $0x620] sm:$0xff]
    %v920 = vld [vmem:[#allocation9 + $0x628] sm:$0xff]
    %v921 = vld [vmem:[#allocation9 + $0x630] sm:$0xff]
    %v922 = vld [vmem:[#allocation9 + $0x638] sm:$0xff]
    %v923 = vld [vmem:[#allocation9 + $0x640] sm:$0xff]
    %v924 = vld [vmem:[#allocation9 + $0x648] sm:$0xff]
    %v925 = vld [vmem:[#allocation9 + $0x650] sm:$0xff]
    %v926 = vld [vmem:[#allocation9 + $0x658] sm:$0xff]
    %v927 = vld [vmem:[#allocation9 + $0x660] sm:$0xff]
    %v928 = vld [vmem:[#allocation9 + $0x668] sm:$0xff]
    %v929 = vld [vmem:[#allocation9 + $0x670] sm:$0xff]
    %v930 = vld [vmem:[#allocation9 + $0x678] sm:$0xff]
    %v931 = vld [vmem:[#allocation9 + $0x680] sm:$0xff]
    %v932 = vld [vmem:[#allocation9 + $0x688] sm:$0xff]
    %v933 = vld [vmem:[#allocation9 + $0x690] sm:$0xff]
    %v934 = vld [vmem:[#allocation9 + $0x698] sm:$0xff]
    %v935 = vld [vmem:[#allocation9 + $0x6a0] sm:$0xff]
    %v936 = vld [vmem:[#allocation9 + $0x6a8] sm:$0xff]
    %v937 = vld [vmem:[#allocation9 + $0x6b0] sm:$0xff]
    %v938 = vld [vmem:[#allocation9 + $0x6b8] sm:$0xff]
    %v939 = vld [vmem:[#allocation9 + $0x6c0] sm:$0xff]
    %v940 = vld [vmem:[#allocation9 + $0x6c8] sm:$0xff]
    %v941 = vld [vmem:[#allocation9 + $0x6d0] sm:$0xff]
    %v942 = vld [vmem:[#allocation9 + $0x6d8] sm:$0xff]
    %v943 = vld [vmem:[#allocation9 + $0x6e0] sm:$0xff]
    %v944 = vld [vmem:[#allocation9 + $0x6e8] sm:$0xff]
    %v945 = vld [vmem:[#allocation9 + $0x6f0] sm:$0xff]
    %v946 = vld [vmem:[#allocation9 + $0x6f8] sm:$0xff]
    %v947 = vld [vmem:[#allocation9 + $0x700] sm:$0xff]
    %v948 = vld [vmem:[#allocation9 + $0x708] sm:$0xff]
    %v949 = vld [vmem:[#allocation9 + $0x710] sm:$0xff]
    %v950 = vld [vmem:[#allocation9 + $0x718] sm:$0xff]
    %v951 = vld [vmem:[#allocation9 + $0x720] sm:$0xff]
    %v952 = vld [vmem:[#allocation9 + $0x728] sm:$0xff]
    %v953 = vld [vmem:[#allocation9 + $0x730] sm:$0xff]
    %v954 = vld [vmem:[#allocation9 + $0x738] sm:$0xff]
    %v955 = vld [vmem:[#allocation9 + $0x740] sm:$0xff]
    %v956 = vld [vmem:[#allocation9 + $0x748] sm:$0xff]
    %v957 = vld [vmem:[#allocation9 + $0x750] sm:$0xff]
    %v958 = vld [vmem:[#allocation9 + $0x758] sm:$0xff]
    %v959 = vld [vmem:[#allocation9 + $0x760] sm:$0xff]
    %v960 = vld [vmem:[#allocation9 + $0x768] sm:$0xff]
    %v961 = vld [vmem:[#allocation9 + $0x770] sm:$0xff]
    %v962 = vld [vmem:[#allocation9 + $0x778] sm:$0xff]
    %v963 = vld [vmem:[#allocation9 + $0x780] sm:$0xff]
    %v964 = vld [vmem:[#allocation9 + $0x788] sm:$0xff]
    %v965 = vld [vmem:[#allocation9 + $0x790] sm:$0xff]
    %v966 = vld [vmem:[#allocation9 + $0x798] sm:$0xff]
    %v967 = vld [vmem:[#allocation9 + $0x7a0] sm:$0xff]
    %v968 = vld [vmem:[#allocation9 + $0x7a8] sm:$0xff]
    %v969 = vld [vmem:[#allocation9 + $0x7b0] sm:$0xff]
    %v970 = vld [vmem:[#allocation9 + $0x7b8] sm:$0xff]
    %v971 = vld [vmem:[#allocation9 + $0x7c0] sm:$0xff]
    %v972 = vld [vmem:[#allocation9 + $0x7c8] sm:$0xff]
    %v973 = vld [vmem:[#allocation9 + $0x7d0] sm:$0xff]
    %v974 = vld [vmem:[#allocation9 + $0x7d8] sm:$0xff]
    %v975 = vld [vmem:[#allocation9 + $0x7e0] sm:$0xff]
    %v976 = vld [vmem:[#allocation9 + $0x7e8] sm:$0xff]
    %v977 = vld [vmem:[#allocation9 + $0x7f0] sm:$0xff]
    %v978 = vld [vmem:[#allocation9 + $0x7f8] sm:$0xff]
    %v979 = vld [vmem:[%s4] sm:$0xf]
    %v981 = vlaneseq
    %v982 = vshrl.u32 %v981, 7
    %v983 = vsub.s32 0, %v982
    %v984 = vrot.slane %v979, %v983
    %v985 = vlaneseq
    %v986 = vshrl.u32 %v985, 7
    %v987 = vsub.s32 1, %v986
    %v988 = vrot.slane %v979, %v987
    %v989 = vlaneseq
    %v990 = vshrl.u32 %v989, 7
    %v991 = vsub.s32 2, %v990
    %v992 = vrot.slane %v979, %v991
    %v993 = vlaneseq
    %v994 = vshrl.u32 %v993, 7
    %v995 = vsub.s32 3, %v994
    %v996 = vrot.slane %v979, %v995
    %v1257 = vunpack.c.l.b16 %v723
    %v1258 = vunpack.c.h.b16 %v723
    %v1259 = vunpack.c.l.b16 %v724
    %v1260 = vunpack.c.h.b16 %v724
    %v1261 = vunpack.c.l.b16 %v725
    %v1262 = vunpack.c.h.b16 %v725
    %v1263 = vunpack.c.l.b16 %v726
    %v1264 = vunpack.c.h.b16 %v726
    %v1265 = vunpack.c.l.b16 %v727
    %v1266 = vunpack.c.h.b16 %v727
    %v1267 = vunpack.c.l.b16 %v728
    %v1268 = vunpack.c.h.b16 %v728
    %v1269 = vunpack.c.l.b16 %v729
    %v1270 = vunpack.c.h.b16 %v729
    %v1271 = vunpack.c.l.b16 %v730
    %v1272 = vunpack.c.h.b16 %v730
    %v1273 = vunpack.c.l.b16 %v731
    %v1274 = vunpack.c.h.b16 %v731
    %v1275 = vunpack.c.l.b16 %v732
    %v1276 = vunpack.c.h.b16 %v732
    %v1277 = vunpack.c.l.b16 %v733
    %v1278 = vunpack.c.h.b16 %v733
    %v1279 = vunpack.c.l.b16 %v734
    %v1280 = vunpack.c.h.b16 %v734
    %v1281 = vunpack.c.l.b16 %v735
    %v1282 = vunpack.c.h.b16 %v735
    %v1283 = vunpack.c.l.b16 %v736
    %v1284 = vunpack.c.h.b16 %v736
    %v1285 = vunpack.c.l.b16 %v737
    %v1286 = vunpack.c.h.b16 %v737
    %v1287 = vunpack.c.l.b16 %v738
    %v1288 = vunpack.c.h.b16 %v738
    %v1289 = vunpack.c.l.b16 %v739
    %v1290 = vunpack.c.h.b16 %v739
    %v1291 = vunpack.c.l.b16 %v740
    %v1292 = vunpack.c.h.b16 %v740
    %v1293 = vunpack.c.l.b16 %v741
    %v1294 = vunpack.c.h.b16 %v741
    %v1295 = vunpack.c.l.b16 %v742
    %v1296 = vunpack.c.h.b16 %v742
    %v1297 = vunpack.c.l.b16 %v743
    %v1298 = vunpack.c.h.b16 %v743
    %v1299 = vunpack.c.l.b16 %v744
    %v1300 = vunpack.c.h.b16 %v744
    %v1301 = vunpack.c.l.b16 %v745
    %v1302 = vunpack.c.h.b16 %v745
    %v1303 = vunpack.c.l.b16 %v746
    %v1304 = vunpack.c.h.b16 %v746
    %v1305 = vunpack.c.l.b16 %v747
    %v1306 = vunpack.c.h.b16 %v747
    %v1307 = vunpack.c.l.b16 %v748
    %v1308 = vunpack.c.h.b16 %v748
    %v1309 = vunpack.c.l.b16 %v749
    %v1310 = vunpack.c.h.b16 %v749
    %v1311 = vunpack.c.l.b16 %v750
    %v1312 = vunpack.c.h.b16 %v750
    %v1313 = vunpack.c.l.b16 %v751
    %v1314 = vunpack.c.h.b16 %v751
    %v1315 = vunpack.c.l.b16 %v752
    %v1316 = vunpack.c.h.b16 %v752
    %v1317 = vunpack.c.l.b16 %v753
    %v1318 = vunpack.c.h.b16 %v753
    %v1319 = vunpack.c.l.b16 %v754
    %v1320 = vunpack.c.h.b16 %v754
    %v1321 = vunpack.c.l.b16 %v755
    %v1322 = vunpack.c.h.b16 %v755
    %v1323 = vunpack.c.l.b16 %v756
    %v1324 = vunpack.c.h.b16 %v756
    %v1325 = vunpack.c.l.b16 %v757
    %v1326 = vunpack.c.h.b16 %v757
    %v1327 = vunpack.c.l.b16 %v758
    %v1328 = vunpack.c.h.b16 %v758
    %v1329 = vunpack.c.l.b16 %v759
    %v1330 = vunpack.c.h.b16 %v759
    %v1331 = vunpack.c.l.b16 %v760
    %v1332 = vunpack.c.h.b16 %v760
    %v1333 = vunpack.c.l.b16 %v761
    %v1334 = vunpack.c.h.b16 %v761
    %v1335 = vunpack.c.l.b16 %v762
    %v1336 = vunpack.c.h.b16 %v762
    %v1337 = vunpack.c.l.b16 %v763
    %v1338 = vunpack.c.h.b16 %v763
    %v1339 = vunpack.c.l.b16 %v764
    %v1340 = vunpack.c.h.b16 %v764
    %v1341 = vunpack.c.l.b16 %v765
    %v1342 = vunpack.c.h.b16 %v765
    %v1343 = vunpack.c.l.b16 %v766
    %v1344 = vunpack.c.h.b16 %v766
    %v1345 = vunpack.c.l.b16 %v767
    %v1346 = vunpack.c.h.b16 %v767
    %v1347 = vunpack.c.l.b16 %v768
    %v1348 = vunpack.c.h.b16 %v768
    %v1349 = vunpack.c.l.b16 %v769
    %v1350 = vunpack.c.h.b16 %v769
    %v1351 = vunpack.c.l.b16 %v770
    %v1352 = vunpack.c.h.b16 %v770
    %v1353 = vunpack.c.l.b16 %v771
    %v1354 = vunpack.c.h.b16 %v771
    %v1355 = vunpack.c.l.b16 %v772
    %v1356 = vunpack.c.h.b16 %v772
    %v1357 = vunpack.c.l.b16 %v773
    %v1358 = vunpack.c.h.b16 %v773
    %v1359 = vunpack.c.l.b16 %v774
    %v1360 = vunpack.c.h.b16 %v774
    %v1361 = vunpack.c.l.b16 %v775
    %v1362 = vunpack.c.h.b16 %v775
    %v1363 = vunpack.c.l.b16 %v776
    %v1364 = vunpack.c.h.b16 %v776
    %v1365 = vunpack.c.l.b16 %v777
    %v1366 = vunpack.c.h.b16 %v777
    %v1367 = vunpack.c.l.b16 %v778
    %v1368 = vunpack.c.h.b16 %v778
    %v1369 = vunpack.c.l.b16 %v779
    %v1370 = vunpack.c.h.b16 %v779
    %v1371 = vunpack.c.l.b16 %v780
    %v1372 = vunpack.c.h.b16 %v780
    %v1373 = vunpack.c.l.b16 %v781
    %v1374 = vunpack.c.h.b16 %v781
    %v1375 = vunpack.c.l.b16 %v782
    %v1376 = vunpack.c.h.b16 %v782
    %v1377 = vunpack.c.l.b16 %v783
    %v1378 = vunpack.c.h.b16 %v783
    %v1379 = vunpack.c.l.b16 %v784
    %v1380 = vunpack.c.h.b16 %v784
    %v1381 = vunpack.c.l.b16 %v785
    %v1382 = vunpack.c.h.b16 %v785
    %v1383 = vunpack.c.l.b16 %v786
    %v1384 = vunpack.c.h.b16 %v786
    %v1385 = vunpack.c.l.b16 %v787
    %v1386 = vunpack.c.h.b16 %v787
    %v1387 = vunpack.c.l.b16 %v788
    %v1388 = vunpack.c.h.b16 %v788
    %v1389 = vunpack.c.l.b16 %v789
    %v1390 = vunpack.c.h.b16 %v789
    %v1391 = vunpack.c.l.b16 %v790
    %v1392 = vunpack.c.h.b16 %v790
    %v1393 = vunpack.c.l.b16 %v791
    %v1394 = vunpack.c.h.b16 %v791
    %v1395 = vunpack.c.l.b16 %v792
    %v1396 = vunpack.c.h.b16 %v792
    %v1397 = vunpack.c.l.b16 %v793
    %v1398 = vunpack.c.h.b16 %v793
    %v1399 = vunpack.c.l.b16 %v794
    %v1400 = vunpack.c.h.b16 %v794
    %v1401 = vunpack.c.l.b16 %v795
    %v1402 = vunpack.c.h.b16 %v795
    %v1403 = vunpack.c.l.b16 %v796
    %v1404 = vunpack.c.h.b16 %v796
    %v1405 = vunpack.c.l.b16 %v797
    %v1406 = vunpack.c.h.b16 %v797
    %v1407 = vunpack.c.l.b16 %v798
    %v1408 = vunpack.c.h.b16 %v798
    %v1409 = vunpack.c.l.b16 %v799
    %v1410 = vunpack.c.h.b16 %v799
    %v1411 = vunpack.c.l.b16 %v800
    %v1412 = vunpack.c.h.b16 %v800
    %v1413 = vunpack.c.l.b16 %v801
    %v1414 = vunpack.c.h.b16 %v801
    %v1415 = vunpack.c.l.b16 %v802
    %v1416 = vunpack.c.h.b16 %v802
    %v1417 = vunpack.c.l.b16 %v803
    %v1418 = vunpack.c.h.b16 %v803
    %v1419 = vunpack.c.l.b16 %v804
    %v1420 = vunpack.c.h.b16 %v804
    %v1421 = vunpack.c.l.b16 %v805
    %v1422 = vunpack.c.h.b16 %v805
    %v1423 = vunpack.c.l.b16 %v806
    %v1424 = vunpack.c.h.b16 %v806
    %v1425 = vunpack.c.l.b16 %v807
    %v1426 = vunpack.c.h.b16 %v807
    %v1427 = vunpack.c.l.b16 %v808
    %v1428 = vunpack.c.h.b16 %v808
    %v1429 = vunpack.c.l.b16 %v809
    %v1430 = vunpack.c.h.b16 %v809
    %v1431 = vunpack.c.l.b16 %v810
    %v1432 = vunpack.c.h.b16 %v810
    %v1433 = vunpack.c.l.b16 %v811
    %v1434 = vunpack.c.h.b16 %v811
    %v1435 = vunpack.c.l.b16 %v812
    %v1436 = vunpack.c.h.b16 %v812
    %v1437 = vunpack.c.l.b16 %v813
    %v1438 = vunpack.c.h.b16 %v813
    %v1439 = vunpack.c.l.b16 %v814
    %v1440 = vunpack.c.h.b16 %v814
    %v1441 = vunpack.c.l.b16 %v815
    %v1442 = vunpack.c.h.b16 %v815
    %v1443 = vunpack.c.l.b16 %v816
    %v1444 = vunpack.c.h.b16 %v816
    %v1445 = vunpack.c.l.b16 %v817
    %v1446 = vunpack.c.h.b16 %v817
    %v1447 = vunpack.c.l.b16 %v818
    %v1448 = vunpack.c.h.b16 %v818
    %v1449 = vunpack.c.l.b16 %v819
    %v1450 = vunpack.c.h.b16 %v819
    %v1451 = vunpack.c.l.b16 %v820
    %v1452 = vunpack.c.h.b16 %v820
    %v1453 = vunpack.c.l.b16 %v821
    %v1454 = vunpack.c.h.b16 %v821
    %v1455 = vunpack.c.l.b16 %v822
    %v1456 = vunpack.c.h.b16 %v822
    %v1457 = vunpack.c.l.b16 %v823
    %v1458 = vunpack.c.h.b16 %v823
    %v1459 = vunpack.c.l.b16 %v824
    %v1460 = vunpack.c.h.b16 %v824
    %v1461 = vunpack.c.l.b16 %v825
    %v1462 = vunpack.c.h.b16 %v825
    %v1463 = vunpack.c.l.b16 %v826
    %v1464 = vunpack.c.h.b16 %v826
    %v1465 = vunpack.c.l.b16 %v827
    %v1466 = vunpack.c.h.b16 %v827
    %v1467 = vunpack.c.l.b16 %v828
    %v1468 = vunpack.c.h.b16 %v828
    %v1469 = vunpack.c.l.b16 %v829
    %v1470 = vunpack.c.h.b16 %v829
    %v1471 = vunpack.c.l.b16 %v830
    %v1472 = vunpack.c.h.b16 %v830
    %v1473 = vunpack.c.l.b16 %v831
    %v1474 = vunpack.c.h.b16 %v831
    %v1475 = vunpack.c.l.b16 %v832
    %v1476 = vunpack.c.h.b16 %v832
    %v1477 = vunpack.c.l.b16 %v833
    %v1478 = vunpack.c.h.b16 %v833
    %v1479 = vunpack.c.l.b16 %v834
    %v1480 = vunpack.c.h.b16 %v834
    %v1481 = vunpack.c.l.b16 %v835
    %v1482 = vunpack.c.h.b16 %v835
    %v1483 = vunpack.c.l.b16 %v836
    %v1484 = vunpack.c.h.b16 %v836
    %v1485 = vunpack.c.l.b16 %v837
    %v1486 = vunpack.c.h.b16 %v837
    %v1487 = vunpack.c.l.b16 %v838
    %v1488 = vunpack.c.h.b16 %v838
    %v1489 = vunpack.c.l.b16 %v839
    %v1490 = vunpack.c.h.b16 %v839
    %v1491 = vunpack.c.l.b16 %v840
    %v1492 = vunpack.c.h.b16 %v840
    %v1493 = vunpack.c.l.b16 %v841
    %v1494 = vunpack.c.h.b16 %v841
    %v1495 = vunpack.c.l.b16 %v842
    %v1496 = vunpack.c.h.b16 %v842
    %v1497 = vunpack.c.l.b16 %v843
    %v1498 = vunpack.c.h.b16 %v843
    %v1499 = vunpack.c.l.b16 %v844
    %v1500 = vunpack.c.h.b16 %v844
    %v1501 = vunpack.c.l.b16 %v845
    %v1502 = vunpack.c.h.b16 %v845
    %v1503 = vunpack.c.l.b16 %v846
    %v1504 = vunpack.c.h.b16 %v846
    %v1505 = vunpack.c.l.b16 %v847
    %v1506 = vunpack.c.h.b16 %v847
    %v1507 = vunpack.c.l.b16 %v848
    %v1508 = vunpack.c.h.b16 %v848
    %v1509 = vunpack.c.l.b16 %v849
    %v1510 = vunpack.c.h.b16 %v849
    %v1511 = vunpack.c.l.b16 %v850
    %v1512 = vunpack.c.h.b16 %v850
    %v1513 = vunpack.c.l.b16 %v851
    %v1514 = vunpack.c.h.b16 %v851
    %v1515 = vunpack.c.l.b16 %v852
    %v1516 = vunpack.c.h.b16 %v852
    %v1517 = vunpack.c.l.b16 %v853
    %v1518 = vunpack.c.h.b16 %v853
    %v1519 = vunpack.c.l.b16 %v854
    %v1520 = vunpack.c.h.b16 %v854
    %v1521 = vunpack.c.l.b16 %v855
    %v1522 = vunpack.c.h.b16 %v855
    %v1523 = vunpack.c.l.b16 %v856
    %v1524 = vunpack.c.h.b16 %v856
    %v1525 = vunpack.c.l.b16 %v857
    %v1526 = vunpack.c.h.b16 %v857
    %v1527 = vunpack.c.l.b16 %v858
    %v1528 = vunpack.c.h.b16 %v858
    %v1529 = vunpack.c.l.b16 %v859
    %v1530 = vunpack.c.h.b16 %v859
    %v1531 = vunpack.c.l.b16 %v860
    %v1532 = vunpack.c.h.b16 %v860
    %v1533 = vunpack.c.l.b16 %v861
    %v1534 = vunpack.c.h.b16 %v861
    %v1535 = vunpack.c.l.b16 %v862
    %v1536 = vunpack.c.h.b16 %v862
    %v1537 = vunpack.c.l.b16 %v863
    %v1538 = vunpack.c.h.b16 %v863
    %v1539 = vunpack.c.l.b16 %v864
    %v1540 = vunpack.c.h.b16 %v864
    %v1541 = vunpack.c.l.b16 %v865
    %v1542 = vunpack.c.h.b16 %v865
    %v1543 = vunpack.c.l.b16 %v866
    %v1544 = vunpack.c.h.b16 %v866
    %v1545 = vunpack.c.l.b16 %v867
    %v1546 = vunpack.c.h.b16 %v867
    %v1547 = vunpack.c.l.b16 %v868
    %v1548 = vunpack.c.h.b16 %v868
    %v1549 = vunpack.c.l.b16 %v869
    %v1550 = vunpack.c.h.b16 %v869
    %v1551 = vunpack.c.l.b16 %v870
    %v1552 = vunpack.c.h.b16 %v870
    %v1553 = vunpack.c.l.b16 %v871
    %v1554 = vunpack.c.h.b16 %v871
    %v1555 = vunpack.c.l.b16 %v872
    %v1556 = vunpack.c.h.b16 %v872
    %v1557 = vunpack.c.l.b16 %v873
    %v1558 = vunpack.c.h.b16 %v873
    %v1559 = vunpack.c.l.b16 %v874
    %v1560 = vunpack.c.h.b16 %v874
    %v1561 = vunpack.c.l.b16 %v875
    %v1562 = vunpack.c.h.b16 %v875
    %v1563 = vunpack.c.l.b16 %v876
    %v1564 = vunpack.c.h.b16 %v876
    %v1565 = vunpack.c.l.b16 %v877
    %v1566 = vunpack.c.h.b16 %v877
    %v1567 = vunpack.c.l.b16 %v878
    %v1568 = vunpack.c.h.b16 %v878
    %v1569 = vunpack.c.l.b16 %v879
    %v1570 = vunpack.c.h.b16 %v879
    %v1571 = vunpack.c.l.b16 %v880
    %v1572 = vunpack.c.h.b16 %v880
    %v1573 = vunpack.c.l.b16 %v881
    %v1574 = vunpack.c.h.b16 %v881
    %v1575 = vunpack.c.l.b16 %v882
    %v1576 = vunpack.c.h.b16 %v882
    %v1577 = vunpack.c.l.b16 %v883
    %v1578 = vunpack.c.h.b16 %v883
    %v1579 = vunpack.c.l.b16 %v884
    %v1580 = vunpack.c.h.b16 %v884
    %v1581 = vunpack.c.l.b16 %v885
    %v1582 = vunpack.c.h.b16 %v885
    %v1583 = vunpack.c.l.b16 %v886
    %v1584 = vunpack.c.h.b16 %v886
    %v1585 = vunpack.c.l.b16 %v887
    %v1586 = vunpack.c.h.b16 %v887
    %v1587 = vunpack.c.l.b16 %v888
    %v1588 = vunpack.c.h.b16 %v888
    %v1589 = vunpack.c.l.b16 %v889
    %v1590 = vunpack.c.h.b16 %v889
    %v1591 = vunpack.c.l.b16 %v890
    %v1592 = vunpack.c.h.b16 %v890
    %v1593 = vunpack.c.l.b16 %v891
    %v1594 = vunpack.c.h.b16 %v891
    %v1595 = vunpack.c.l.b16 %v892
    %v1596 = vunpack.c.h.b16 %v892
    %v1597 = vunpack.c.l.b16 %v893
    %v1598 = vunpack.c.h.b16 %v893
    %v1599 = vunpack.c.l.b16 %v894
    %v1600 = vunpack.c.h.b16 %v894
    %v1601 = vunpack.c.l.b16 %v895
    %v1602 = vunpack.c.h.b16 %v895
    %v1603 = vunpack.c.l.b16 %v896
    %v1604 = vunpack.c.h.b16 %v896
    %v1605 = vunpack.c.l.b16 %v897
    %v1606 = vunpack.c.h.b16 %v897
    %v1607 = vunpack.c.l.b16 %v898
    %v1608 = vunpack.c.h.b16 %v898
    %v1609 = vunpack.c.l.b16 %v899
    %v1610 = vunpack.c.h.b16 %v899
    %v1611 = vunpack.c.l.b16 %v900
    %v1612 = vunpack.c.h.b16 %v900
    %v1613 = vunpack.c.l.b16 %v901
    %v1614 = vunpack.c.h.b16 %v901
    %v1615 = vunpack.c.l.b16 %v902
    %v1616 = vunpack.c.h.b16 %v902
    %v1617 = vunpack.c.l.b16 %v903
    %v1618 = vunpack.c.h.b16 %v903
    %v1619 = vunpack.c.l.b16 %v904
    %v1620 = vunpack.c.h.b16 %v904
    %v1621 = vunpack.c.l.b16 %v905
    %v1622 = vunpack.c.h.b16 %v905
    %v1623 = vunpack.c.l.b16 %v906
    %v1624 = vunpack.c.h.b16 %v906
    %v1625 = vunpack.c.l.b16 %v907
    %v1626 = vunpack.c.h.b16 %v907
    %v1627 = vunpack.c.l.b16 %v908
    %v1628 = vunpack.c.h.b16 %v908
    %v1629 = vunpack.c.l.b16 %v909
    %v1630 = vunpack.c.h.b16 %v909
    %v1631 = vunpack.c.l.b16 %v910
    %v1632 = vunpack.c.h.b16 %v910
    %v1633 = vunpack.c.l.b16 %v911
    %v1634 = vunpack.c.h.b16 %v911
    %v1635 = vunpack.c.l.b16 %v912
    %v1636 = vunpack.c.h.b16 %v912
    %v1637 = vunpack.c.l.b16 %v913
    %v1638 = vunpack.c.h.b16 %v913
    %v1639 = vunpack.c.l.b16 %v914
    %v1640 = vunpack.c.h.b16 %v914
    %v1641 = vunpack.c.l.b16 %v915
    %v1642 = vunpack.c.h.b16 %v915
    %v1643 = vunpack.c.l.b16 %v916
    %v1644 = vunpack.c.h.b16 %v916
    %v1645 = vunpack.c.l.b16 %v917
    %v1646 = vunpack.c.h.b16 %v917
    %v1647 = vunpack.c.l.b16 %v918
    %v1648 = vunpack.c.h.b16 %v918
    %v1649 = vunpack.c.l.b16 %v919
    %v1650 = vunpack.c.h.b16 %v919
    %v1651 = vunpack.c.l.b16 %v920
    %v1652 = vunpack.c.h.b16 %v920
    %v1653 = vunpack.c.l.b16 %v921
    %v1654 = vunpack.c.h.b16 %v921
    %v1655 = vunpack.c.l.b16 %v922
    %v1656 = vunpack.c.h.b16 %v922
    %v1657 = vunpack.c.l.b16 %v923
    %v1658 = vunpack.c.h.b16 %v923
    %v1659 = vunpack.c.l.b16 %v924
    %v1660 = vunpack.c.h.b16 %v924
    %v1661 = vunpack.c.l.b16 %v925
    %v1662 = vunpack.c.h.b16 %v925
    %v1663 = vunpack.c.l.b16 %v926
    %v1664 = vunpack.c.h.b16 %v926
    %v1665 = vunpack.c.l.b16 %v927
    %v1666 = vunpack.c.h.b16 %v927
    %v1667 = vunpack.c.l.b16 %v928
    %v1668 = vunpack.c.h.b16 %v928
    %v1669 = vunpack.c.l.b16 %v929
    %v1670 = vunpack.c.h.b16 %v929
    %v1671 = vunpack.c.l.b16 %v930
    %v1672 = vunpack.c.h.b16 %v930
    %v1673 = vunpack.c.l.b16 %v931
    %v1674 = vunpack.c.h.b16 %v931
    %v1675 = vunpack.c.l.b16 %v932
    %v1676 = vunpack.c.h.b16 %v932
    %v1677 = vunpack.c.l.b16 %v933
    %v1678 = vunpack.c.h.b16 %v933
    %v1679 = vunpack.c.l.b16 %v934
    %v1680 = vunpack.c.h.b16 %v934
    %v1681 = vunpack.c.l.b16 %v935
    %v1682 = vunpack.c.h.b16 %v935
    %v1683 = vunpack.c.l.b16 %v936
    %v1684 = vunpack.c.h.b16 %v936
    %v1685 = vunpack.c.l.b16 %v937
    %v1686 = vunpack.c.h.b16 %v937
    %v1687 = vunpack.c.l.b16 %v938
    %v1688 = vunpack.c.h.b16 %v938
    %v1689 = vunpack.c.l.b16 %v939
    %v1690 = vunpack.c.h.b16 %v939
    %v1691 = vunpack.c.l.b16 %v940
    %v1692 = vunpack.c.h.b16 %v940
    %v1693 = vunpack.c.l.b16 %v941
    %v1694 = vunpack.c.h.b16 %v941
    %v1695 = vunpack.c.l.b16 %v942
    %v1696 = vunpack.c.h.b16 %v942
    %v1697 = vunpack.c.l.b16 %v943
    %v1698 = vunpack.c.h.b16 %v943
    %v1699 = vunpack.c.l.b16 %v944
    %v1700 = vunpack.c.h.b16 %v944
    %v1701 = vunpack.c.l.b16 %v945
    %v1702 = vunpack.c.h.b16 %v945
    %v1703 = vunpack.c.l.b16 %v946
    %v1704 = vunpack.c.h.b16 %v946
    %v1705 = vunpack.c.l.b16 %v947
    %v1706 = vunpack.c.h.b16 %v947
    %v1707 = vunpack.c.l.b16 %v948
    %v1708 = vunpack.c.h.b16 %v948
    %v1709 = vunpack.c.l.b16 %v949
    %v1710 = vunpack.c.h.b16 %v949
    %v1711 = vunpack.c.l.b16 %v950
    %v1712 = vunpack.c.h.b16 %v950
    %v1713 = vunpack.c.l.b16 %v951
    %v1714 = vunpack.c.h.b16 %v951
    %v1715 = vunpack.c.l.b16 %v952
    %v1716 = vunpack.c.h.b16 %v952
    %v1717 = vunpack.c.l.b16 %v953
    %v1718 = vunpack.c.h.b16 %v953
    %v1719 = vunpack.c.l.b16 %v954
    %v1720 = vunpack.c.h.b16 %v954
    %v1721 = vunpack.c.l.b16 %v955
    %v1722 = vunpack.c.h.b16 %v955
    %v1723 = vunpack.c.l.b16 %v956
    %v1724 = vunpack.c.h.b16 %v956
    %v1725 = vunpack.c.l.b16 %v957
    %v1726 = vunpack.c.h.b16 %v957
    %v1727 = vunpack.c.l.b16 %v958
    %v1728 = vunpack.c.h.b16 %v958
    %v1729 = vunpack.c.l.b16 %v959
    %v1730 = vunpack.c.h.b16 %v959
    %v1731 = vunpack.c.l.b16 %v960
    %v1732 = vunpack.c.h.b16 %v960
    %v1733 = vunpack.c.l.b16 %v961
    %v1734 = vunpack.c.h.b16 %v961
    %v1735 = vunpack.c.l.b16 %v962
    %v1736 = vunpack.c.h.b16 %v962
    %v1737 = vunpack.c.l.b16 %v963
    %v1738 = vunpack.c.h.b16 %v963
    %v1739 = vunpack.c.l.b16 %v964
    %v1740 = vunpack.c.h.b16 %v964
    %v1741 = vunpack.c.l.b16 %v965
    %v1742 = vunpack.c.h.b16 %v965
    %v1743 = vunpack.c.l.b16 %v966
    %v1744 = vunpack.c.h.b16 %v966
    %v1745 = vunpack.c.l.b16 %v967
    %v1746 = vunpack.c.h.b16 %v967
    %v1747 = vunpack.c.l.b16 %v968
    %v1748 = vunpack.c.h.b16 %v968
    %v1749 = vunpack.c.l.b16 %v969
    %v1750 = vunpack.c.h.b16 %v969
    %v1751 = vunpack.c.l.b16 %v970
    %v1752 = vunpack.c.h.b16 %v970
    %v1753 = vunpack.c.l.b16 %v971
    %v1754 = vunpack.c.h.b16 %v971
    %v1755 = vunpack.c.l.b16 %v972
    %v1756 = vunpack.c.h.b16 %v972
    %v1757 = vunpack.c.l.b16 %v973
    %v1758 = vunpack.c.h.b16 %v973
    %v1759 = vunpack.c.l.b16 %v974
    %v1760 = vunpack.c.h.b16 %v974
    %v1761 = vunpack.c.l.b16 %v975
    %v1762 = vunpack.c.h.b16 %v975
    %v1763 = vunpack.c.l.b16 %v976
    %v1764 = vunpack.c.h.b16 %v976
    %v1765 = vunpack.c.l.b16 %v977
    %v1766 = vunpack.c.h.b16 %v977
    %v1767 = vunpack.c.l.b16 %v978
    %v1768 = vunpack.c.h.b16 %v978
    %v1769 = vpack.c.b16 %v1261, %v1257
    %v1770 = vpack.c.b16 %v1262, %v1258
    %v1771 = vpack.c.b16 %v1263, %v1259
    %v1772 = vpack.c.b16 %v1264, %v1260
    %v1773 = vpack.c.b16 %v1269, %v1265
    %v1774 = vpack.c.b16 %v1270, %v1266
    %v1775 = vpack.c.b16 %v1271, %v1267
    %v1776 = vpack.c.b16 %v1272, %v1268
    %v1777 = vpack.c.b16 %v1277, %v1273
    %v1778 = vpack.c.b16 %v1278, %v1274
    %v1779 = vpack.c.b16 %v1279, %v1275
    %v1780 = vpack.c.b16 %v1280, %v1276
    %v1781 = vpack.c.b16 %v1285, %v1281
    %v1782 = vpack.c.b16 %v1286, %v1282
    %v1783 = vpack.c.b16 %v1287, %v1283
    %v1784 = vpack.c.b16 %v1288, %v1284
    %v1785 = vpack.c.b16 %v1293, %v1289
    %v1786 = vpack.c.b16 %v1294, %v1290
    %v1787 = vpack.c.b16 %v1295, %v1291
    %v1788 = vpack.c.b16 %v1296, %v1292
    %v1789 = vpack.c.b16 %v1301, %v1297
    %v1790 = vpack.c.b16 %v1302, %v1298
    %v1791 = vpack.c.b16 %v1303, %v1299
    %v1792 = vpack.c.b16 %v1304, %v1300
    %v1793 = vpack.c.b16 %v1309, %v1305
    %v1794 = vpack.c.b16 %v1310, %v1306
    %v1795 = vpack.c.b16 %v1311, %v1307
    %v1796 = vpack.c.b16 %v1312, %v1308
    %v1797 = vpack.c.b16 %v1317, %v1313
    %v1798 = vpack.c.b16 %v1318, %v1314
    %v1799 = vpack.c.b16 %v1319, %v1315
    %v1800 = vpack.c.b16 %v1320, %v1316
    %v1801 = vpack.c.b16 %v1325, %v1321
    %v1802 = vpack.c.b16 %v1326, %v1322
    %v1803 = vpack.c.b16 %v1327, %v1323
    %v1804 = vpack.c.b16 %v1328, %v1324
    %v1805 = vpack.c.b16 %v1333, %v1329
    %v1806 = vpack.c.b16 %v1334, %v1330
    %v1807 = vpack.c.b16 %v1335, %v1331
    %v1808 = vpack.c.b16 %v1336, %v1332
    %v1809 = vpack.c.b16 %v1341, %v1337
    %v1810 = vpack.c.b16 %v1342, %v1338
    %v1811 = vpack.c.b16 %v1343, %v1339
    %v1812 = vpack.c.b16 %v1344, %v1340
    %v1813 = vpack.c.b16 %v1349, %v1345
    %v1814 = vpack.c.b16 %v1350, %v1346
    %v1815 = vpack.c.b16 %v1351, %v1347
    %v1816 = vpack.c.b16 %v1352, %v1348
    %v1817 = vpack.c.b16 %v1357, %v1353
    %v1818 = vpack.c.b16 %v1358, %v1354
    %v1819 = vpack.c.b16 %v1359, %v1355
    %v1820 = vpack.c.b16 %v1360, %v1356
    %v1821 = vpack.c.b16 %v1365, %v1361
    %v1822 = vpack.c.b16 %v1366, %v1362
    %v1823 = vpack.c.b16 %v1367, %v1363
    %v1824 = vpack.c.b16 %v1368, %v1364
    %v1825 = vpack.c.b16 %v1373, %v1369
    %v1826 = vpack.c.b16 %v1374, %v1370
    %v1827 = vpack.c.b16 %v1375, %v1371
    %v1828 = vpack.c.b16 %v1376, %v1372
    %v1829 = vpack.c.b16 %v1381, %v1377
    %v1830 = vpack.c.b16 %v1382, %v1378
    %v1831 = vpack.c.b16 %v1383, %v1379
    %v1832 = vpack.c.b16 %v1384, %v1380
    %v1833 = vpack.c.b16 %v1389, %v1385
    %v1834 = vpack.c.b16 %v1390, %v1386
    %v1835 = vpack.c.b16 %v1391, %v1387
    %v1836 = vpack.c.b16 %v1392, %v1388
    %v1837 = vpack.c.b16 %v1397, %v1393
    %v1838 = vpack.c.b16 %v1398, %v1394
    %v1839 = vpack.c.b16 %v1399, %v1395
    %v1840 = vpack.c.b16 %v1400, %v1396
    %v1841 = vpack.c.b16 %v1405, %v1401
    %v1842 = vpack.c.b16 %v1406, %v1402
    %v1843 = vpack.c.b16 %v1407, %v1403
    %v1844 = vpack.c.b16 %v1408, %v1404
    %v1845 = vpack.c.b16 %v1413, %v1409
    %v1846 = vpack.c.b16 %v1414, %v1410
    %v1847 = vpack.c.b16 %v1415, %v1411
    %v1848 = vpack.c.b16 %v1416, %v1412
    %v1849 = vpack.c.b16 %v1421, %v1417
    %v1850 = vpack.c.b16 %v1422, %v1418
    %v1851 = vpack.c.b16 %v1423, %v1419
    %v1852 = vpack.c.b16 %v1424, %v1420
    %v1853 = vpack.c.b16 %v1429, %v1425
    %v1854 = vpack.c.b16 %v1430, %v1426
    %v1855 = vpack.c.b16 %v1431, %v1427
    %v1856 = vpack.c.b16 %v1432, %v1428
    %v1857 = vpack.c.b16 %v1437, %v1433
    %v1858 = vpack.c.b16 %v1438, %v1434
    %v1859 = vpack.c.b16 %v1439, %v1435
    %v1860 = vpack.c.b16 %v1440, %v1436
    %v1861 = vpack.c.b16 %v1445, %v1441
    %v1862 = vpack.c.b16 %v1446, %v1442
    %v1863 = vpack.c.b16 %v1447, %v1443
    %v1864 = vpack.c.b16 %v1448, %v1444
    %v1865 = vpack.c.b16 %v1453, %v1449
    %v1866 = vpack.c.b16 %v1454, %v1450
    %v1867 = vpack.c.b16 %v1455, %v1451
    %v1868 = vpack.c.b16 %v1456, %v1452
    %v1869 = vpack.c.b16 %v1461, %v1457
    %v1870 = vpack.c.b16 %v1462, %v1458
    %v1871 = vpack.c.b16 %v1463, %v1459
    %v1872 = vpack.c.b16 %v1464, %v1460
    %v1873 = vpack.c.b16 %v1469, %v1465
    %v1874 = vpack.c.b16 %v1470, %v1466
    %v1875 = vpack.c.b16 %v1471, %v1467
    %v1876 = vpack.c.b16 %v1472, %v1468
    %v1877 = vpack.c.b16 %v1477, %v1473
    %v1878 = vpack.c.b16 %v1478, %v1474
    %v1879 = vpack.c.b16 %v1479, %v1475
    %v1880 = vpack.c.b16 %v1480, %v1476
    %v1881 = vpack.c.b16 %v1485, %v1481
    %v1882 = vpack.c.b16 %v1486, %v1482
    %v1883 = vpack.c.b16 %v1487, %v1483
    %v1884 = vpack.c.b16 %v1488, %v1484
    %v1885 = vpack.c.b16 %v1493, %v1489
    %v1886 = vpack.c.b16 %v1494, %v1490
    %v1887 = vpack.c.b16 %v1495, %v1491
    %v1888 = vpack.c.b16 %v1496, %v1492
    %v1889 = vpack.c.b16 %v1501, %v1497
    %v1890 = vpack.c.b16 %v1502, %v1498
    %v1891 = vpack.c.b16 %v1503, %v1499
    %v1892 = vpack.c.b16 %v1504, %v1500
    %v1893 = vpack.c.b16 %v1509, %v1505
    %v1894 = vpack.c.b16 %v1510, %v1506
    %v1895 = vpack.c.b16 %v1511, %v1507
    %v1896 = vpack.c.b16 %v1512, %v1508
    %v1897 = vpack.c.b16 %v1517, %v1513
    %v1898 = vpack.c.b16 %v1518, %v1514
    %v1899 = vpack.c.b16 %v1519, %v1515
    %v1900 = vpack.c.b16 %v1520, %v1516
    %v1901 = vpack.c.b16 %v1525, %v1521
    %v1902 = vpack.c.b16 %v1526, %v1522
    %v1903 = vpack.c.b16 %v1527, %v1523
    %v1904 = vpack.c.b16 %v1528, %v1524
    %v1905 = vpack.c.b16 %v1533, %v1529
    %v1906 = vpack.c.b16 %v1534, %v1530
    %v1907 = vpack.c.b16 %v1535, %v1531
    %v1908 = vpack.c.b16 %v1536, %v1532
    %v1909 = vpack.c.b16 %v1541, %v1537
    %v1910 = vpack.c.b16 %v1542, %v1538
    %v1911 = vpack.c.b16 %v1543, %v1539
    %v1912 = vpack.c.b16 %v1544, %v1540
    %v1913 = vpack.c.b16 %v1549, %v1545
    %v1914 = vpack.c.b16 %v1550, %v1546
    %v1915 = vpack.c.b16 %v1551, %v1547
    %v1916 = vpack.c.b16 %v1552, %v1548
    %v1917 = vpack.c.b16 %v1557, %v1553
    %v1918 = vpack.c.b16 %v1558, %v1554
    %v1919 = vpack.c.b16 %v1559, %v1555
    %v1920 = vpack.c.b16 %v1560, %v1556
    %v1921 = vpack.c.b16 %v1565, %v1561
    %v1922 = vpack.c.b16 %v1566, %v1562
    %v1923 = vpack.c.b16 %v1567, %v1563
    %v1924 = vpack.c.b16 %v1568, %v1564
    %v1925 = vpack.c.b16 %v1573, %v1569
    %v1926 = vpack.c.b16 %v1574, %v1570
    %v1927 = vpack.c.b16 %v1575, %v1571
    %v1928 = vpack.c.b16 %v1576, %v1572
    %v1929 = vpack.c.b16 %v1581, %v1577
    %v1930 = vpack.c.b16 %v1582, %v1578
    %v1931 = vpack.c.b16 %v1583, %v1579
    %v1932 = vpack.c.b16 %v1584, %v1580
    %v1933 = vpack.c.b16 %v1589, %v1585
    %v1934 = vpack.c.b16 %v1590, %v1586
    %v1935 = vpack.c.b16 %v1591, %v1587
    %v1936 = vpack.c.b16 %v1592, %v1588
    %v1937 = vpack.c.b16 %v1597, %v1593
    %v1938 = vpack.c.b16 %v1598, %v1594
    %v1939 = vpack.c.b16 %v1599, %v1595
    %v1940 = vpack.c.b16 %v1600, %v1596
    %v1941 = vpack.c.b16 %v1605, %v1601
    %v1942 = vpack.c.b16 %v1606, %v1602
    %v1943 = vpack.c.b16 %v1607, %v1603
    %v1944 = vpack.c.b16 %v1608, %v1604
    %v1945 = vpack.c.b16 %v1613, %v1609
    %v1946 = vpack.c.b16 %v1614, %v1610
    %v1947 = vpack.c.b16 %v1615, %v1611
    %v1948 = vpack.c.b16 %v1616, %v1612
    %v1949 = vpack.c.b16 %v1621, %v1617
    %v1950 = vpack.c.b16 %v1622, %v1618
    %v1951 = vpack.c.b16 %v1623, %v1619
    %v1952 = vpack.c.b16 %v1624, %v1620
    %v1953 = vpack.c.b16 %v1629, %v1625
    %v1954 = vpack.c.b16 %v1630, %v1626
    %v1955 = vpack.c.b16 %v1631, %v1627
    %v1956 = vpack.c.b16 %v1632, %v1628
    %v1957 = vpack.c.b16 %v1637, %v1633
    %v1958 = vpack.c.b16 %v1638, %v1634
    %v1959 = vpack.c.b16 %v1639, %v1635
    %v1960 = vpack.c.b16 %v1640, %v1636
    %v1961 = vpack.c.b16 %v1645, %v1641
    %v1962 = vpack.c.b16 %v1646, %v1642
    %v1963 = vpack.c.b16 %v1647, %v1643
    %v1964 = vpack.c.b16 %v1648, %v1644
    %v1965 = vpack.c.b16 %v1653, %v1649
    %v1966 = vpack.c.b16 %v1654, %v1650
    %v1967 = vpack.c.b16 %v1655, %v1651
    %v1968 = vpack.c.b16 %v1656, %v1652
    %v1969 = vpack.c.b16 %v1661, %v1657
    %v1970 = vpack.c.b16 %v1662, %v1658
    %v1971 = vpack.c.b16 %v1663, %v1659
    %v1972 = vpack.c.b16 %v1664, %v1660
    %v1973 = vpack.c.b16 %v1669, %v1665
    %v1974 = vpack.c.b16 %v1670, %v1666
    %v1975 = vpack.c.b16 %v1671, %v1667
    %v1976 = vpack.c.b16 %v1672, %v1668
    %v1977 = vpack.c.b16 %v1677, %v1673
    %v1978 = vpack.c.b16 %v1678, %v1674
    %v1979 = vpack.c.b16 %v1679, %v1675
    %v1980 = vpack.c.b16 %v1680, %v1676
    %v1981 = vpack.c.b16 %v1685, %v1681
    %v1982 = vpack.c.b16 %v1686, %v1682
    %v1983 = vpack.c.b16 %v1687, %v1683
    %v1984 = vpack.c.b16 %v1688, %v1684
    %v1985 = vpack.c.b16 %v1693, %v1689
    %v1986 = vpack.c.b16 %v1694, %v1690
    %v1987 = vpack.c.b16 %v1695, %v1691
    %v1988 = vpack.c.b16 %v1696, %v1692
    %v1989 = vpack.c.b16 %v1701, %v1697
    %v1990 = vpack.c.b16 %v1702, %v1698
    %v1991 = vpack.c.b16 %v1703, %v1699
    %v1992 = vpack.c.b16 %v1704, %v1700
    %v1993 = vpack.c.b16 %v1709, %v1705
    %v1994 = vpack.c.b16 %v1710, %v1706
    %v1995 = vpack.c.b16 %v1711, %v1707
    %v1996 = vpack.c.b16 %v1712, %v1708
    %v1997 = vpack.c.b16 %v1717, %v1713
    %v1998 = vpack.c.b16 %v1718, %v1714
    %v1999 = vpack.c.b16 %v1719, %v1715
    %v2000 = vpack.c.b16 %v1720, %v1716
    %v2001 = vpack.c.b16 %v1725, %v1721
    %v2002 = vpack.c.b16 %v1726, %v1722
    %v2003 = vpack.c.b16 %v1727, %v1723
    %v2004 = vpack.c.b16 %v1728, %v1724
    %v2005 = vpack.c.b16 %v1733, %v1729
    %v2006 = vpack.c.b16 %v1734, %v1730
    %v2007 = vpack.c.b16 %v1735, %v1731
    %v2008 = vpack.c.b16 %v1736, %v1732
    %v2009 = vpack.c.b16 %v1741, %v1737
    %v2010 = vpack.c.b16 %v1742, %v1738
    %v2011 = vpack.c.b16 %v1743, %v1739
    %v2012 = vpack.c.b16 %v1744, %v1740
    %v2013 = vpack.c.b16 %v1749, %v1745
    %v2014 = vpack.c.b16 %v1750, %v1746
    %v2015 = vpack.c.b16 %v1751, %v1747
    %v2016 = vpack.c.b16 %v1752, %v1748
    %v2017 = vpack.c.b16 %v1757, %v1753
    %v2018 = vpack.c.b16 %v1758, %v1754
    %v2019 = vpack.c.b16 %v1759, %v1755
    %v2020 = vpack.c.b16 %v1760, %v1756
    %v2021 = vpack.c.b16 %v1765, %v1761
    %v2022 = vpack.c.b16 %v1766, %v1762
    %v2023 = vpack.c.b16 %v1767, %v1763
    %v2024 = vpack.c.b16 %v1768, %v1764
    %2281 = vmatprep.subr.bf16.mxu0 %v1798
    %2282 = vmatpush1.bf16.msra.mxu0 %v1797
    %2283 = vmatprep.subr.bf16.mxu0 %v1794
    %2284 = vmatpush1.bf16.msra.mxu0 %v1793
    %2285 = vmatprep.subr.bf16.mxu0 %v1790
    %2286 = vmatpush1.bf16.msra.mxu0 %v1789
    %2287 = vmatprep.subr.bf16.mxu0 %v1786
    %2288 = vmatpush1.bf16.msra.mxu0 %v1785
    %2289 = vmatprep.subr.bf16.mxu0 %v1782
    %2290 = vmatpush1.bf16.msra.mxu0 %v1781
    %2291 = vmatprep.subr.bf16.mxu0 %v1778
    %2292 = vmatpush1.bf16.msra.mxu0 %v1777
    %2293 = vmatprep.subr.bf16.mxu0 %v1774
    %2294 = vmatpush1.bf16.msra.mxu0 %v1773
    %2295 = vmatprep.subr.bf16.mxu0 %v1770
    %2296 = vmatpush1.bf16.msra.mxu0 %v1769
    %2297 = vmatprep.subr.bf16.mxu0 %v1830
    %2298 = vmatpush2.bf16.msra.mxu0 %v1829
    %2299 = vmatprep.subr.bf16.mxu0 %v1826
    %2300 = vmatpush2.bf16.msra.mxu0 %v1825
    %2301 = vmatprep.subr.bf16.mxu0 %v1822
    %2302 = vmatpush2.bf16.msra.mxu0 %v1821
    %2303 = vmatprep.subr.bf16.mxu0 %v1818
    %2304 = vmatpush2.bf16.msra.mxu0 %v1817
    %2305 = vmatprep.subr.bf16.mxu0 %v1814
    %2306 = vmatpush2.bf16.msra.mxu0 %v1813
    %2307 = vmatprep.subr.bf16.mxu0 %v1810
    %2308 = vmatpush2.bf16.msra.mxu0 %v1809
    %2309 = vmatprep.subr.bf16.mxu0 %v1806
    %2310 = vmatpush2.bf16.msra.mxu0 %v1805
    %2311 = vmatprep.subr.bf16.mxu0 %v1802
    %2312 = vmatpush2.bf16.msra.mxu0 %v1801
    %2313 = vmatprep.mubr.bf16.mxu0 %v716
    %2314 = vmatmul.mubr.bf16.gmra.mxu0 %v715
    %v2315 = vpop.f32.mrf.mxu0
    %v2316 = vadd.f32 %v984, %v2315
    %v2317 = vpop.f32.mrf.mxu0
    %v2318 = vadd.f32 %v988, %v2317
    %v2319 = vpop.f32.mrf.mxu0
    %v2320 = vpop.f32.mrf.mxu0
    %2321 = vdwg.mxu0
    %2322 = vmatprep.subr.bf16.mxu0 %v1862
    %2323 = vmatpush1.bf16.msra.mxu0 %v1861
    %2324 = vmatprep.subr.bf16.mxu0 %v1858
    %2325 = vmatpush1.bf16.msra.mxu0 %v1857
    %2326 = vmatprep.subr.bf16.mxu0 %v1854
    %2327 = vmatpush1.bf16.msra.mxu0 %v1853
    %2328 = vmatprep.subr.bf16.mxu0 %v1850
    %2329 = vmatpush1.bf16.msra.mxu0 %v1849
    %2330 = vmatprep.subr.bf16.mxu0 %v1846
    %2331 = vmatpush1.bf16.msra.mxu0 %v1845
    %2332 = vmatprep.subr.bf16.mxu0 %v1842
    %2333 = vmatpush1.bf16.msra.mxu0 %v1841
    %2334 = vmatprep.subr.bf16.mxu0 %v1838
    %2335 = vmatpush1.bf16.msra.mxu0 %v1837
    %2336 = vmatprep.subr.bf16.mxu0 %v1834
    %2337 = vmatpush1.bf16.msra.mxu0 %v1833
    %2338 = vmatprep.subr.bf16.mxu0 %v1894
    %2339 = vmatpush2.bf16.msra.mxu0 %v1893
    %2340 = vmatprep.subr.bf16.mxu0 %v1890
    %2341 = vmatpush2.bf16.msra.mxu0 %v1889
    %2342 = vmatprep.subr.bf16.mxu0 %v1886
    %2343 = vmatpush2.bf16.msra.mxu0 %v1885
    %2344 = vmatprep.subr.bf16.mxu0 %v1882
    %2345 = vmatpush2.bf16.msra.mxu0 %v1881
    %2346 = vmatprep.subr.bf16.mxu0 %v1878
    %2347 = vmatpush2.bf16.msra.mxu0 %v1877
    %2348 = vmatprep.subr.bf16.mxu0 %v1874
    %2349 = vmatpush2.bf16.msra.mxu0 %v1873
    %2350 = vmatprep.subr.bf16.mxu0 %v1870
    %2351 = vmatpush2.bf16.msra.mxu0 %v1869
    %2352 = vmatprep.subr.bf16.mxu0 %v1866
    %2353 = vmatpush2.bf16.msra.mxu0 %v1865
    %2354 = vmatprep.mubr.bf16.mxu0 %v718
    %2355 = vmatmul.mubr.bf16.gmra.mxu0 %v717
    %v2356 = vpop.f32.mrf.mxu0
    %v2357 = vadd.f32 %v2316, %v2356
    %v2358 = vpop.f32.mrf.mxu0
    %v2359 = vadd.f32 %v2318, %v2358
    %v2360 = vpop.f32.mrf.mxu0
    %v2361 = vpop.f32.mrf.mxu0
    %2362 = vdwg.mxu0
    %2363 = vmatprep.subr.bf16.mxu0 %v1926
    %2364 = vmatpush1.bf16.msra.mxu0 %v1925
    %2365 = vmatprep.subr.bf16.mxu0 %v1922
    %2366 = vmatpush1.bf16.msra.mxu0 %v1921
    %2367 = vmatprep.subr.bf16.mxu0 %v1918
    %2368 = vmatpush1.bf16.msra.mxu0 %v1917
    %2369 = vmatprep.subr.bf16.mxu0 %v1914
    %2370 = vmatpush1.bf16.msra.mxu0 %v1913
    %2371 = vmatprep.subr.bf16.mxu0 %v1910
    %2372 = vmatpush1.bf16.msra.mxu0 %v1909
    %2373 = vmatprep.subr.bf16.mxu0 %v1906
    %2374 = vmatpush1.bf16.msra.mxu0 %v1905
    %2375 = vmatprep.subr.bf16.mxu0 %v1902
    %2376 = vmatpush1.bf16.msra.mxu0 %v1901
    %2377 = vmatprep.subr.bf16.mxu0 %v1898
    %2378 = vmatpush1.bf16.msra.mxu0 %v1897
    %2379 = vmatprep.subr.bf16.mxu0 %v1958
    %2380 = vmatpush2.bf16.msra.mxu0 %v1957
    %2381 = vmatprep.subr.bf16.mxu0 %v1954
    %2382 = vmatpush2.bf16.msra.mxu0 %v1953
    %2383 = vmatprep.subr.bf16.mxu0 %v1950
    %2384 = vmatpush2.bf16.msra.mxu0 %v1949
    %2385 = vmatprep.subr.bf16.mxu0 %v1946
    %2386 = vmatpush2.bf16.msra.mxu0 %v1945
    %2387 = vmatprep.subr.bf16.mxu0 %v1942
    %2388 = vmatpush2.bf16.msra.mxu0 %v1941
    %2389 = vmatprep.subr.bf16.mxu0 %v1938
    %2390 = vmatpush2.bf16.msra.mxu0 %v1937
    %2391 = vmatprep.subr.bf16.mxu0 %v1934
    %2392 = vmatpush2.bf16.msra.mxu0 %v1933
    %2393 = vmatprep.subr.bf16.mxu0 %v1930
    %2394 = vmatpush2.bf16.msra.mxu0 %v1929
    %2395 = vmatprep.mubr.bf16.mxu0 %v720
    %2396 = vmatmul.mubr.bf16.gmra.mxu0 %v719
    %v2397 = vpop.f32.mrf.mxu0
    %v2398 = vadd.f32 %v2357, %v2397
    %v2399 = vpop.f32.mrf.mxu0
    %v2400 = vadd.f32 %v2359, %v2399
    %v2401 = vpop.f32.mrf.mxu0
    %v2402 = vpop.f32.mrf.mxu0
    %2403 = vdwg.mxu0
    %2404 = vmatprep.subr.bf16.mxu0 %v1990
    %2405 = vmatpush1.bf16.msra.mxu0 %v1989
    %2406 = vmatprep.subr.bf16.mxu0 %v1986
    %2407 = vmatpush1.bf16.msra.mxu0 %v1985
    %2408 = vmatprep.subr.bf16.mxu0 %v1982
    %2409 = vmatpush1.bf16.msra.mxu0 %v1981
    %2410 = vmatprep.subr.bf16.mxu0 %v1978
    %2411 = vmatpush1.bf16.msra.mxu0 %v1977
    %2412 = vmatprep.subr.bf16.mxu0 %v1974
    %2413 = vmatpush1.bf16.msra.mxu0 %v1973
    %2414 = vmatprep.subr.bf16.mxu0 %v1970
    %2415 = vmatpush1.bf16.msra.mxu0 %v1969
    %2416 = vmatprep.subr.bf16.mxu0 %v1966
    %2417 = vmatpush1.bf16.msra.mxu0 %v1965
    %2418 = vmatprep.subr.bf16.mxu0 %v1962
    %2419 = vmatpush1.bf16.msra.mxu0 %v1961
    %2420 = vmatprep.subr.bf16.mxu0 %v2022
    %2421 = vmatpush2.bf16.msra.mxu0 %v2021
    %2422 = vmatprep.subr.bf16.mxu0 %v2018
    %2423 = vmatpush2.bf16.msra.mxu0 %v2017
    %2424 = vmatprep.subr.bf16.mxu0 %v2014
    %2425 = vmatpush2.bf16.msra.mxu0 %v2013
    %2426 = vmatprep.subr.bf16.mxu0 %v2010
    %2427 = vmatpush2.bf16.msra.mxu0 %v2009
    %2428 = vmatprep.subr.bf16.mxu0 %v2006
    %2429 = vmatpush2.bf16.msra.mxu0 %v2005
    %2430 = vmatprep.subr.bf16.mxu0 %v2002
    %2431 = vmatpush2.bf16.msra.mxu0 %v2001
    %2432 = vmatprep.subr.bf16.mxu0 %v1998
    %2433 = vmatpush2.bf16.msra.mxu0 %v1997
    %2434 = vmatprep.subr.bf16.mxu0 %v1994
    %2435 = vmatpush2.bf16.msra.mxu0 %v1993
    %2436 = vmatprep.mubr.bf16.mxu0 %v722
    %2437 = vmatmul.mubr.bf16.gmra.mxu0 %v721
    %v2438 = vpop.f32.mrf.mxu0
    %v2439 = vadd.f32 %v2398, %v2438
    %v2440 = vpop.f32.mrf.mxu0
    %v2441 = vadd.f32 %v2400, %v2440
    %v2442 = vpop.f32.mrf.mxu0
    %v2443 = vpop.f32.mrf.mxu0
    %2444 = vdwg.mxu0
    %2445 = vmatprep.subr.bf16.mxu0 %v1800
    %2446 = vmatpush1.bf16.msra.mxu0 %v1799
    %2447 = vmatprep.subr.bf16.mxu0 %v1796
    %2448 = vmatpush1.bf16.msra.mxu0 %v1795
    %2449 = vmatprep.subr.bf16.mxu0 %v1792
    %2450 = vmatpush1.bf16.msra.mxu0 %v1791
    %2451 = vmatprep.subr.bf16.mxu0 %v1788
    %2452 = vmatpush1.bf16.msra.mxu0 %v1787
    %2453 = vmatprep.subr.bf16.mxu0 %v1784
    %2454 = vmatpush1.bf16.msra.mxu0 %v1783
    %2455 = vmatprep.subr.bf16.mxu0 %v1780
    %2456 = vmatpush1.bf16.msra.mxu0 %v1779
    %2457 = vmatprep.subr.bf16.mxu0 %v1776
    %2458 = vmatpush1.bf16.msra.mxu0 %v1775
    %2459 = vmatprep.subr.bf16.mxu0 %v1772
    %2460 = vmatpush1.bf16.msra.mxu0 %v1771
    %2461 = vmatprep.subr.bf16.mxu0 %v1832
    %2462 = vmatpush2.bf16.msra.mxu0 %v1831
    %2463 = vmatprep.subr.bf16.mxu0 %v1828
    %2464 = vmatpush2.bf16.msra.mxu0 %v1827
    %2465 = vmatprep.subr.bf16.mxu0 %v1824
    %2466 = vmatpush2.bf16.msra.mxu0 %v1823
    %2467 = vmatprep.subr.bf16.mxu0 %v1820
    %2468 = vmatpush2.bf16.msra.mxu0 %v1819
    %2469 = vmatprep.subr.bf16.mxu0 %v1816
    %2470 = vmatpush2.bf16.msra.mxu0 %v1815
    %2471 = vmatprep.subr.bf16.mxu0 %v1812
    %2472 = vmatpush2.bf16.msra.mxu0 %v1811
    %2473 = vmatprep.subr.bf16.mxu0 %v1808
    %2474 = vmatpush2.bf16.msra.mxu0 %v1807
    %2475 = vmatprep.subr.bf16.mxu0 %v1804
    %2476 = vmatpush2.bf16.msra.mxu0 %v1803
    %2477 = vmatprep.mubr.bf16.mxu0 %v716
    %2478 = vmatmul.mubr.bf16.gmra.mxu0 %v715
    %v2479 = vpop.f32.mrf.mxu0
    %v2480 = vadd.f32 %v992, %v2479
    %v2481 = vpop.f32.mrf.mxu0
    %v2482 = vadd.f32 %v996, %v2481
    %v2483 = vpop.f32.mrf.mxu0
    %v2484 = vpop.f32.mrf.mxu0
    %2485 = vdwg.mxu0
    %2486 = vmatprep.subr.bf16.mxu0 %v1864
    %2487 = vmatpush1.bf16.msra.mxu0 %v1863
    %2488 = vmatprep.subr.bf16.mxu0 %v1860
    %2489 = vmatpush1.bf16.msra.mxu0 %v1859
    %2490 = vmatprep.subr.bf16.mxu0 %v1856
    %2491 = vmatpush1.bf16.msra.mxu0 %v1855
    %2492 = vmatprep.subr.bf16.mxu0 %v1852
    %2493 = vmatpush1.bf16.msra.mxu0 %v1851
    %2494 = vmatprep.subr.bf16.mxu0 %v1848
    %2495 = vmatpush1.bf16.msra.mxu0 %v1847
    %2496 = vmatprep.subr.bf16.mxu0 %v1844
    %2497 = vmatpush1.bf16.msra.mxu0 %v1843
    %2498 = vmatprep.subr.bf16.mxu0 %v1840
    %2499 = vmatpush1.bf16.msra.mxu0 %v1839
    %2500 = vmatprep.subr.bf16.mxu0 %v1836
    %2501 = vmatpush1.bf16.msra.mxu0 %v1835
    %2502 = vmatprep.subr.bf16.mxu0 %v1896
    %2503 = vmatpush2.bf16.msra.mxu0 %v1895
    %2504 = vmatprep.subr.bf16.mxu0 %v1892
    %2505 = vmatpush2.bf16.msra.mxu0 %v1891
    %2506 = vmatprep.subr.bf16.mxu0 %v1888
    %2507 = vmatpush2.bf16.msra.mxu0 %v1887
    %2508 = vmatprep.subr.bf16.mxu0 %v1884
    %2509 = vmatpush2.bf16.msra.mxu0 %v1883
    %2510 = vmatprep.subr.bf16.mxu0 %v1880
    %2511 = vmatpush2.bf16.msra.mxu0 %v1879
    %2512 = vmatprep.subr.bf16.mxu0 %v1876
    %2513 = vmatpush2.bf16.msra.mxu0 %v1875
    %2514 = vmatprep.subr.bf16.mxu0 %v1872
    %2515 = vmatpush2.bf16.msra.mxu0 %v1871
    %2516 = vmatprep.subr.bf16.mxu0 %v1868
    %2517 = vmatpush2.bf16.msra.mxu0 %v1867
    %2518 = vmatprep.mubr.bf16.mxu0 %v718
    %2519 = vmatmul.mubr.bf16.gmra.mxu0 %v717
    %v2520 = vpop.f32.mrf.mxu0
    %v2521 = vadd.f32 %v2480, %v2520
    %v2522 = vpop.f32.mrf.mxu0
    %v2523 = vadd.f32 %v2482, %v2522
    %v2524 = vpop.f32.mrf.mxu0
    %v2525 = vpop.f32.mrf.mxu0
    %2526 = vdwg.mxu0
    %2527 = vmatprep.subr.bf16.mxu0 %v1928
    %2528 = vmatpush1.bf16.msra.mxu0 %v1927
    %2529 = vmatprep.subr.bf16.mxu0 %v1924
    %2530 = vmatpush1.bf16.msra.mxu0 %v1923
    %2531 = vmatprep.subr.bf16.mxu0 %v1920
    %2532 = vmatpush1.bf16.msra.mxu0 %v1919
    %2533 = vmatprep.subr.bf16.mxu0 %v1916
    %2534 = vmatpush1.bf16.msra.mxu0 %v1915
    %2535 = vmatprep.subr.bf16.mxu0 %v1912
    %2536 = vmatpush1.bf16.msra.mxu0 %v1911
    %2537 = vmatprep.subr.bf16.mxu0 %v1908
    %2538 = vmatpush1.bf16.msra.mxu0 %v1907
    %2539 = vmatprep.subr.bf16.mxu0 %v1904
    %2540 = vmatpush1.bf16.msra.mxu0 %v1903
    %2541 = vmatprep.subr.bf16.mxu0 %v1900
    %2542 = vmatpush1.bf16.msra.mxu0 %v1899
    %2543 = vmatprep.subr.bf16.mxu0 %v1960
    %2544 = vmatpush2.bf16.msra.mxu0 %v1959
    %2545 = vmatprep.subr.bf16.mxu0 %v1956
    %2546 = vmatpush2.bf16.msra.mxu0 %v1955
    %2547 = vmatprep.subr.bf16.mxu0 %v1952
    %2548 = vmatpush2.bf16.msra.mxu0 %v1951
    %2549 = vmatprep.subr.bf16.mxu0 %v1948
    %2550 = vmatpush2.bf16.msra.mxu0 %v1947
    %2551 = vmatprep.subr.bf16.mxu0 %v1944
    %2552 = vmatpush2.bf16.msra.mxu0 %v1943
    %2553 = vmatprep.subr.bf16.mxu0 %v1940
    %2554 = vmatpush2.bf16.msra.mxu0 %v1939
    %2555 = vmatprep.subr.bf16.mxu0 %v1936
    %2556 = vmatpush2.bf16.msra.mxu0 %v1935
    %2557 = vmatprep.subr.bf16.mxu0 %v1932
    %2558 = vmatpush2.bf16.msra.mxu0 %v1931
    %2559 = vmatprep.mubr.bf16.mxu0 %v720
    %2560 = vmatmul.mubr.bf16.gmra.mxu0 %v719
    %v2561 = vpop.f32.mrf.mxu0
    %v2562 = vadd.f32 %v2521, %v2561
    %v2563 = vpop.f32.mrf.mxu0
    %v2564 = vadd.f32 %v2523, %v2563
    %v2565 = vpop.f32.mrf.mxu0
    %v2566 = vpop.f32.mrf.mxu0
    %2567 = vdwg.mxu0
    %2568 = vmatprep.subr.bf16.mxu0 %v1992
    %2569 = vmatpush1.bf16.msra.mxu0 %v1991
    %2570 = vmatprep.subr.bf16.mxu0 %v1988
    %2571 = vmatpush1.bf16.msra.mxu0 %v1987
    %2572 = vmatprep.subr.bf16.mxu0 %v1984
    %2573 = vmatpush1.bf16.msra.mxu0 %v1983
    %2574 = vmatprep.subr.bf16.mxu0 %v1980
    %2575 = vmatpush1.bf16.msra.mxu0 %v1979
    %2576 = vmatprep.subr.bf16.mxu0 %v1976
    %2577 = vmatpush1.bf16.msra.mxu0 %v1975
    %2578 = vmatprep.subr.bf16.mxu0 %v1972
    %2579 = vmatpush1.bf16.msra.mxu0 %v1971
    %2580 = vmatprep.subr.bf16.mxu0 %v1968
    %2581 = vmatpush1.bf16.msra.mxu0 %v1967
    %2582 = vmatprep.subr.bf16.mxu0 %v1964
    %2583 = vmatpush1.bf16.msra.mxu0 %v1963
    %2584 = vmatprep.subr.bf16.mxu0 %v2024
    %2585 = vmatpush2.bf16.msra.mxu0 %v2023
    %2586 = vmatprep.subr.bf16.mxu0 %v2020
    %2587 = vmatpush2.bf16.msra.mxu0 %v2019
    %2588 = vmatprep.subr.bf16.mxu0 %v2016
    %2589 = vmatpush2.bf16.msra.mxu0 %v2015
    %2590 = vmatprep.subr.bf16.mxu0 %v2012
    %2591 = vmatpush2.bf16.msra.mxu0 %v2011
    %2592 = vmatprep.subr.bf16.mxu0 %v2008
    %2593 = vmatpush2.bf16.msra.mxu0 %v2007
    %2594 = vmatprep.subr.bf16.mxu0 %v2004
    %2595 = vmatpush2.bf16.msra.mxu0 %v2003
    %2596 = vmatprep.subr.bf16.mxu0 %v2000
    %2597 = vmatpush2.bf16.msra.mxu0 %v1999
    %2598 = vmatprep.subr.bf16.mxu0 %v1996
    %2599 = vmatpush2.bf16.msra.mxu0 %v1995
    %2600 = vmatprep.mubr.bf16.mxu0 %v722
    %2601 = vmatmul.mubr.bf16.gmra.mxu0 %v721
    %v2602 = vpop.f32.mrf.mxu0
    %v2603 = vadd.f32 %v2562, %v2602
    %v2604 = vpop.f32.mrf.mxu0
    %v2605 = vadd.f32 %v2564, %v2604
    %v2606 = vpop.f32.mrf.mxu0
    %v2607 = vpop.f32.mrf.mxu0
    %2608 = vdwg.mxu0
    %vm2609 = vcmp.ge.f32.partialorder %v2439, 0.0
    %vm2610 = vcmp.ge.f32.partialorder %v2441, 0.0
    %vm2611 = vcmp.ge.f32.partialorder %v2603, 0.0
    %vm2612 = vcmp.ge.f32.partialorder %v2605, 0.0
    %v2613 = vmul.f32 %v2439, 0.2
    %v2614 = vmul.f32 %v2441, 0.2
    %v2615 = vmul.f32 %v2603, 0.2
    %v2616 = vmul.f32 %v2605, 0.2
    %v2617 = vsel %vm2609, %v2439, %v2613
    %v2618 = vsel %vm2610, %v2441, %v2614
    %v2619 = vsel %vm2611, %v2603, %v2615
    %v2620 = vsel %vm2612, %v2605, %v2616
    %v2621 = vpack.c.bf16 %v2617, %v2617
    %v2622 = vpack.c.bf16 %v2618, %v2618
    %v2623 = vpack.c.bf16 %v2619, %v2619
    %v2624 = vpack.c.bf16 %v2620, %v2620
    %v2625 = vld [vmem:[#allocation11] sm:$0xff]
    %v2626 = vld [vmem:[#allocation11 + $0x8] sm:$0xff]
    %v2627 = vld [vmem:[#allocation11 + $0x10] sm:$0xff]
    %v2628 = vld [vmem:[#allocation11 + $0x18] sm:$0xff]
    %v2629 = vld [vmem:[#allocation11 + $0x20] sm:$0xff]
    %v2630 = vld [vmem:[#allocation11 + $0x28] sm:$0xff]
    %v2631 = vld [vmem:[#allocation11 + $0x30] sm:$0xff]
    %v2632 = vld [vmem:[#allocation11 + $0x38] sm:$0xff]
    %v2633 = vld [vmem:[#allocation11 + $0x40] sm:$0xff]
    %v2634 = vld [vmem:[#allocation11 + $0x48] sm:$0xff]
    %v2635 = vld [vmem:[#allocation11 + $0x50] sm:$0xff]
    %v2636 = vld [vmem:[#allocation11 + $0x58] sm:$0xff]
    %v2637 = vld [vmem:[#allocation11 + $0x60] sm:$0xff]
    %v2638 = vld [vmem:[#allocation11 + $0x68] sm:$0xff]
    %v2639 = vld [vmem:[#allocation11 + $0x70] sm:$0xff]
    %v2640 = vld [vmem:[#allocation11 + $0x78] sm:$0xff]
    %v2641 = vld [vmem:[#allocation11 + $0x80] sm:$0xff]
    %v2642 = vld [vmem:[#allocation11 + $0x88] sm:$0xff]
    %v2643 = vld [vmem:[#allocation11 + $0x90] sm:$0xff]
    %v2644 = vld [vmem:[#allocation11 + $0x98] sm:$0xff]
    %v2645 = vld [vmem:[#allocation11 + $0xa0] sm:$0xff]
    %v2646 = vld [vmem:[#allocation11 + $0xa8] sm:$0xff]
    %v2647 = vld [vmem:[#allocation11 + $0xb0] sm:$0xff]
    %v2648 = vld [vmem:[#allocation11 + $0xb8] sm:$0xff]
    %v2649 = vld [vmem:[#allocation11 + $0xc0] sm:$0xff]
    %v2650 = vld [vmem:[#allocation11 + $0xc8] sm:$0xff]
    %v2651 = vld [vmem:[#allocation11 + $0xd0] sm:$0xff]
    %v2652 = vld [vmem:[#allocation11 + $0xd8] sm:$0xff]
    %v2653 = vld [vmem:[#allocation11 + $0xe0] sm:$0xff]
    %v2654 = vld [vmem:[#allocation11 + $0xe8] sm:$0xff]
    %v2655 = vld [vmem:[#allocation11 + $0xf0] sm:$0xff]
    %v2656 = vld [vmem:[#allocation11 + $0xf8] sm:$0xff]
    %v2657 = vld [vmem:[#allocation11 + $0x100] sm:$0xff]
    %v2658 = vld [vmem:[#allocation11 + $0x108] sm:$0xff]
    %v2659 = vld [vmem:[#allocation11 + $0x110] sm:$0xff]
    %v2660 = vld [vmem:[#allocation11 + $0x118] sm:$0xff]
    %v2661 = vld [vmem:[#allocation11 + $0x120] sm:$0xff]
    %v2662 = vld [vmem:[#allocation11 + $0x128] sm:$0xff]
    %v2663 = vld [vmem:[#allocation11 + $0x130] sm:$0xff]
    %v2664 = vld [vmem:[#allocation11 + $0x138] sm:$0xff]
    %v2665 = vld [vmem:[#allocation11 + $0x140] sm:$0xff]
    %v2666 = vld [vmem:[#allocation11 + $0x148] sm:$0xff]
    %v2667 = vld [vmem:[#allocation11 + $0x150] sm:$0xff]
    %v2668 = vld [vmem:[#allocation11 + $0x158] sm:$0xff]
    %v2669 = vld [vmem:[#allocation11 + $0x160] sm:$0xff]
    %v2670 = vld [vmem:[#allocation11 + $0x168] sm:$0xff]
    %v2671 = vld [vmem:[#allocation11 + $0x170] sm:$0xff]
    %v2672 = vld [vmem:[#allocation11 + $0x178] sm:$0xff]
    %v2673 = vld [vmem:[#allocation11 + $0x180] sm:$0xff]
    %v2674 = vld [vmem:[#allocation11 + $0x188] sm:$0xff]
    %v2675 = vld [vmem:[#allocation11 + $0x190] sm:$0xff]
    %v2676 = vld [vmem:[#allocation11 + $0x198] sm:$0xff]
    %v2677 = vld [vmem:[#allocation11 + $0x1a0] sm:$0xff]
    %v2678 = vld [vmem:[#allocation11 + $0x1a8] sm:$0xff]
    %v2679 = vld [vmem:[#allocation11 + $0x1b0] sm:$0xff]
    %v2680 = vld [vmem:[#allocation11 + $0x1b8] sm:$0xff]
    %v2681 = vld [vmem:[#allocation11 + $0x1c0] sm:$0xff]
    %v2682 = vld [vmem:[#allocation11 + $0x1c8] sm:$0xff]
    %v2683 = vld [vmem:[#allocation11 + $0x1d0] sm:$0xff]
    %v2684 = vld [vmem:[#allocation11 + $0x1d8] sm:$0xff]
    %v2685 = vld [vmem:[#allocation11 + $0x1e0] sm:$0xff]
    %v2686 = vld [vmem:[#allocation11 + $0x1e8] sm:$0xff]
    %v2687 = vld [vmem:[#allocation11 + $0x1f0] sm:$0xff]
    %v2688 = vld [vmem:[#allocation11 + $0x1f8] sm:$0xff]
    %v2689 = vld [vmem:[%s6] sm:$0x3]
    %v2691 = vlaneseq
    %v2692 = vshrl.u32 %v2691, 7
    %v2693 = vsub.s32 0, %v2692
    %v2694 = vrot.slane %v2689, %v2693
    %v2695 = vlaneseq
    %v2696 = vshrl.u32 %v2695, 7
    %v2697 = vsub.s32 1, %v2696
    %v2698 = vrot.slane %v2689, %v2697
    %v2765 = vunpack.c.l.b16 %v2625
    %v2766 = vunpack.c.h.b16 %v2625
    %v2767 = vunpack.c.l.b16 %v2626
    %v2768 = vunpack.c.h.b16 %v2626
    %v2769 = vunpack.c.l.b16 %v2627
    %v2770 = vunpack.c.h.b16 %v2627
    %v2771 = vunpack.c.l.b16 %v2628
    %v2772 = vunpack.c.h.b16 %v2628
    %v2773 = vunpack.c.l.b16 %v2629
    %v2774 = vunpack.c.h.b16 %v2629
    %v2775 = vunpack.c.l.b16 %v2630
    %v2776 = vunpack.c.h.b16 %v2630
    %v2777 = vunpack.c.l.b16 %v2631
    %v2778 = vunpack.c.h.b16 %v2631
    %v2779 = vunpack.c.l.b16 %v2632
    %v2780 = vunpack.c.h.b16 %v2632
    %v2781 = vunpack.c.l.b16 %v2633
    %v2782 = vunpack.c.h.b16 %v2633
    %v2783 = vunpack.c.l.b16 %v2634
    %v2784 = vunpack.c.h.b16 %v2634
    %v2785 = vunpack.c.l.b16 %v2635
    %v2786 = vunpack.c.h.b16 %v2635
    %v2787 = vunpack.c.l.b16 %v2636
    %v2788 = vunpack.c.h.b16 %v2636
    %v2789 = vunpack.c.l.b16 %v2637
    %v2790 = vunpack.c.h.b16 %v2637
    %v2791 = vunpack.c.l.b16 %v2638
    %v2792 = vunpack.c.h.b16 %v2638
    %v2793 = vunpack.c.l.b16 %v2639
    %v2794 = vunpack.c.h.b16 %v2639
    %v2795 = vunpack.c.l.b16 %v2640
    %v2796 = vunpack.c.h.b16 %v2640
    %v2797 = vunpack.c.l.b16 %v2641
    %v2798 = vunpack.c.h.b16 %v2641
    %v2799 = vunpack.c.l.b16 %v2642
    %v2800 = vunpack.c.h.b16 %v2642
    %v2801 = vunpack.c.l.b16 %v2643
    %v2802 = vunpack.c.h.b16 %v2643
    %v2803 = vunpack.c.l.b16 %v2644
    %v2804 = vunpack.c.h.b16 %v2644
    %v2805 = vunpack.c.l.b16 %v2645
    %v2806 = vunpack.c.h.b16 %v2645
    %v2807 = vunpack.c.l.b16 %v2646
    %v2808 = vunpack.c.h.b16 %v2646
    %v2809 = vunpack.c.l.b16 %v2647
    %v2810 = vunpack.c.h.b16 %v2647
    %v2811 = vunpack.c.l.b16 %v2648
    %v2812 = vunpack.c.h.b16 %v2648
    %v2813 = vunpack.c.l.b16 %v2649
    %v2814 = vunpack.c.h.b16 %v2649
    %v2815 = vunpack.c.l.b16 %v2650
    %v2816 = vunpack.c.h.b16 %v2650
    %v2817 = vunpack.c.l.b16 %v2651
    %v2818 = vunpack.c.h.b16 %v2651
    %v2819 = vunpack.c.l.b16 %v2652
    %v2820 = vunpack.c.h.b16 %v2652
    %v2821 = vunpack.c.l.b16 %v2653
    %v2822 = vunpack.c.h.b16 %v2653
    %v2823 = vunpack.c.l.b16 %v2654
    %v2824 = vunpack.c.h.b16 %v2654
    %v2825 = vunpack.c.l.b16 %v2655
    %v2826 = vunpack.c.h.b16 %v2655
    %v2827 = vunpack.c.l.b16 %v2656
    %v2828 = vunpack.c.h.b16 %v2656
    %v2829 = vunpack.c.l.b16 %v2657
    %v2830 = vunpack.c.h.b16 %v2657
    %v2831 = vunpack.c.l.b16 %v2658
    %v2832 = vunpack.c.h.b16 %v2658
    %v2833 = vunpack.c.l.b16 %v2659
    %v2834 = vunpack.c.h.b16 %v2659
    %v2835 = vunpack.c.l.b16 %v2660
    %v2836 = vunpack.c.h.b16 %v2660
    %v2837 = vunpack.c.l.b16 %v2661
    %v2838 = vunpack.c.h.b16 %v2661
    %v2839 = vunpack.c.l.b16 %v2662
    %v2840 = vunpack.c.h.b16 %v2662
    %v2841 = vunpack.c.l.b16 %v2663
    %v2842 = vunpack.c.h.b16 %v2663
    %v2843 = vunpack.c.l.b16 %v2664
    %v2844 = vunpack.c.h.b16 %v2664
    %v2845 = vunpack.c.l.b16 %v2665
    %v2846 = vunpack.c.h.b16 %v2665
    %v2847 = vunpack.c.l.b16 %v2666
    %v2848 = vunpack.c.h.b16 %v2666
    %v2849 = vunpack.c.l.b16 %v2667
    %v2850 = vunpack.c.h.b16 %v2667
    %v2851 = vunpack.c.l.b16 %v2668
    %v2852 = vunpack.c.h.b16 %v2668
    %v2853 = vunpack.c.l.b16 %v2669
    %v2854 = vunpack.c.h.b16 %v2669
    %v2855 = vunpack.c.l.b16 %v2670
    %v2856 = vunpack.c.h.b16 %v2670
    %v2857 = vunpack.c.l.b16 %v2671
    %v2858 = vunpack.c.h.b16 %v2671
    %v2859 = vunpack.c.l.b16 %v2672
    %v2860 = vunpack.c.h.b16 %v2672
    %v2861 = vunpack.c.l.b16 %v2673
    %v2862 = vunpack.c.h.b16 %v2673
    %v2863 = vunpack.c.l.b16 %v2674
    %v2864 = vunpack.c.h.b16 %v2674
    %v2865 = vunpack.c.l.b16 %v2675
    %v2866 = vunpack.c.h.b16 %v2675
    %v2867 = vunpack.c.l.b16 %v2676
    %v2868 = vunpack.c.h.b16 %v2676
    %v2869 = vunpack.c.l.b16 %v2677
    %v2870 = vunpack.c.h.b16 %v2677
    %v2871 = vunpack.c.l.b16 %v2678
    %v2872 = vunpack.c.h.b16 %v2678
    %v2873 = vunpack.c.l.b16 %v2679
    %v2874 = vunpack.c.h.b16 %v2679
    %v2875 = vunpack.c.l.b16 %v2680
    %v2876 = vunpack.c.h.b16 %v2680
    %v2877 = vunpack.c.l.b16 %v2681
    %v2878 = vunpack.c.h.b16 %v2681
    %v2879 = vunpack.c.l.b16 %v2682
    %v2880 = vunpack.c.h.b16 %v2682
    %v2881 = vunpack.c.l.b16 %v2683
    %v2882 = vunpack.c.h.b16 %v2683
    %v2883 = vunpack.c.l.b16 %v2684
    %v2884 = vunpack.c.h.b16 %v2684
    %v2885 = vunpack.c.l.b16 %v2685
    %v2886 = vunpack.c.h.b16 %v2685
    %v2887 = vunpack.c.l.b16 %v2686
    %v2888 = vunpack.c.h.b16 %v2686
    %v2889 = vunpack.c.l.b16 %v2687
    %v2890 = vunpack.c.h.b16 %v2687
    %v2891 = vunpack.c.l.b16 %v2688
    %v2892 = vunpack.c.h.b16 %v2688
    %v2893 = vpack.c.b16 %v2767, %v2765
    %v2894 = vpack.c.b16 %v2768, %v2766
    %v2895 = vpack.c.b16 %v2771, %v2769
    %v2896 = vpack.c.b16 %v2772, %v2770
    %v2897 = vpack.c.b16 %v2775, %v2773
    %v2898 = vpack.c.b16 %v2776, %v2774
    %v2899 = vpack.c.b16 %v2779, %v2777
    %v2900 = vpack.c.b16 %v2780, %v2778
    %v2901 = vpack.c.b16 %v2783, %v2781
    %v2902 = vpack.c.b16 %v2784, %v2782
    %v2903 = vpack.c.b16 %v2787, %v2785
    %v2904 = vpack.c.b16 %v2788, %v2786
    %v2905 = vpack.c.b16 %v2791, %v2789
    %v2906 = vpack.c.b16 %v2792, %v2790
    %v2907 = vpack.c.b16 %v2795, %v2793
    %v2908 = vpack.c.b16 %v2796, %v2794
    %v2909 = vpack.c.b16 %v2799, %v2797
    %v2910 = vpack.c.b16 %v2800, %v2798
    %v2911 = vpack.c.b16 %v2803, %v2801
    %v2912 = vpack.c.b16 %v2804, %v2802
    %v2913 = vpack.c.b16 %v2807, %v2805
    %v2914 = vpack.c.b16 %v2808, %v2806
    %v2915 = vpack.c.b16 %v2811, %v2809
    %v2916 = vpack.c.b16 %v2812, %v2810
    %v2917 = vpack.c.b16 %v2815, %v2813
    %v2918 = vpack.c.b16 %v2816, %v2814
    %v2919 = vpack.c.b16 %v2819, %v2817
    %v2920 = vpack.c.b16 %v2820, %v2818
    %v2921 = vpack.c.b16 %v2823, %v2821
    %v2922 = vpack.c.b16 %v2824, %v2822
    %v2923 = vpack.c.b16 %v2827, %v2825
    %v2924 = vpack.c.b16 %v2828, %v2826
    %v2925 = vpack.c.b16 %v2831, %v2829
    %v2926 = vpack.c.b16 %v2832, %v2830
    %v2927 = vpack.c.b16 %v2835, %v2833
    %v2928 = vpack.c.b16 %v2836, %v2834
    %v2929 = vpack.c.b16 %v2839, %v2837
    %v2930 = vpack.c.b16 %v2840, %v2838
    %v2931 = vpack.c.b16 %v2843, %v2841
    %v2932 = vpack.c.b16 %v2844, %v2842
    %v2933 = vpack.c.b16 %v2847, %v2845
    %v2934 = vpack.c.b16 %v2848, %v2846
    %v2935 = vpack.c.b16 %v2851, %v2849
    %v2936 = vpack.c.b16 %v2852, %v2850
    %v2937 = vpack.c.b16 %v2855, %v2853
    %v2938 = vpack.c.b16 %v2856, %v2854
    %v2939 = vpack.c.b16 %v2859, %v2857
    %v2940 = vpack.c.b16 %v2860, %v2858
    %v2941 = vpack.c.b16 %v2863, %v2861
    %v2942 = vpack.c.b16 %v2864, %v2862
    %v2943 = vpack.c.b16 %v2867, %v2865
    %v2944 = vpack.c.b16 %v2868, %v2866
    %v2945 = vpack.c.b16 %v2871, %v2869
    %v2946 = vpack.c.b16 %v2872, %v2870
    %v2947 = vpack.c.b16 %v2875, %v2873
    %v2948 = vpack.c.b16 %v2876, %v2874
    %v2949 = vpack.c.b16 %v2879, %v2877
    %v2950 = vpack.c.b16 %v2880, %v2878
    %v2951 = vpack.c.b16 %v2883, %v2881
    %v2952 = vpack.c.b16 %v2884, %v2882
    %v2953 = vpack.c.b16 %v2887, %v2885
    %v2954 = vpack.c.b16 %v2888, %v2886
    %v2955 = vpack.c.b16 %v2891, %v2889
    %v2956 = vpack.c.b16 %v2892, %v2890
    %3021 = vmatprep.subr.bf16.mxu0 %v2908
    %3022 = vmatpush1.bf16.msra.mxu0 %v2907
    %3023 = vmatprep.subr.bf16.mxu0 %v2906
    %3024 = vmatpush1.bf16.msra.mxu0 %v2905
    %3025 = vmatprep.subr.bf16.mxu0 %v2904
    %3026 = vmatpush1.bf16.msra.mxu0 %v2903
    %3027 = vmatprep.subr.bf16.mxu0 %v2902
    %3028 = vmatpush1.bf16.msra.mxu0 %v2901
    %3029 = vmatprep.subr.bf16.mxu0 %v2900
    %3030 = vmatpush1.bf16.msra.mxu0 %v2899
    %3031 = vmatprep.subr.bf16.mxu0 %v2898
    %3032 = vmatpush1.bf16.msra.mxu0 %v2897
    %3033 = vmatprep.subr.bf16.mxu0 %v2896
    %3034 = vmatpush1.bf16.msra.mxu0 %v2895
    %3035 = vmatprep.subr.bf16.mxu0 %v2894
    %3036 = vmatpush1.bf16.msra.mxu0 %v2893
    %3037 = vmatprep.subr.bf16.mxu0 %v2924
    %3038 = vmatpush2.bf16.msra.mxu0 %v2923
    %3039 = vmatprep.subr.bf16.mxu0 %v2922
    %3040 = vmatpush2.bf16.msra.mxu0 %v2921
    %3041 = vmatprep.subr.bf16.mxu0 %v2920
    %3042 = vmatpush2.bf16.msra.mxu0 %v2919
    %3043 = vmatprep.subr.bf16.mxu0 %v2918
    %3044 = vmatpush2.bf16.msra.mxu0 %v2917
    %3045 = vmatprep.subr.bf16.mxu0 %v2916
    %3046 = vmatpush2.bf16.msra.mxu0 %v2915
    %3047 = vmatprep.subr.bf16.mxu0 %v2914
    %3048 = vmatpush2.bf16.msra.mxu0 %v2913
    %3049 = vmatprep.subr.bf16.mxu0 %v2912
    %3050 = vmatpush2.bf16.msra.mxu0 %v2911
    %3051 = vmatprep.subr.bf16.mxu0 %v2910
    %3052 = vmatpush2.bf16.msra.mxu0 %v2909
    %3053 = vmatprep.mubr.bf16.mxu0 %v2622
    %3054 = vmatmul.mubr.bf16.gmra.mxu0 %v2621
    %v3055 = vpop.f32.mrf.mxu0
    %v3056 = vadd.f32 %v2694, %v3055
    %v3057 = vpop.f32.mrf.mxu0
    %v3058 = vadd.f32 %v2698, %v3057
    %v3059 = vpop.f32.mrf.mxu0
    %v3060 = vpop.f32.mrf.mxu0
    %3061 = vdwg.mxu0
    %3062 = vmatprep.subr.bf16.mxu0 %v2940
    %3063 = vmatpush1.bf16.msra.mxu0 %v2939
    %3064 = vmatprep.subr.bf16.mxu0 %v2938
    %3065 = vmatpush1.bf16.msra.mxu0 %v2937
    %3066 = vmatprep.subr.bf16.mxu0 %v2936
    %3067 = vmatpush1.bf16.msra.mxu0 %v2935
    %3068 = vmatprep.subr.bf16.mxu0 %v2934
    %3069 = vmatpush1.bf16.msra.mxu0 %v2933
    %3070 = vmatprep.subr.bf16.mxu0 %v2932
    %3071 = vmatpush1.bf16.msra.mxu0 %v2931
    %3072 = vmatprep.subr.bf16.mxu0 %v2930
    %3073 = vmatpush1.bf16.msra.mxu0 %v2929
    %3074 = vmatprep.subr.bf16.mxu0 %v2928
    %3075 = vmatpush1.bf16.msra.mxu0 %v2927
    %3076 = vmatprep.subr.bf16.mxu0 %v2926
    %3077 = vmatpush1.bf16.msra.mxu0 %v2925
    %3078 = vmatprep.subr.bf16.mxu0 %v2956
    %3079 = vmatpush2.bf16.msra.mxu0 %v2955
    %3080 = vmatprep.subr.bf16.mxu0 %v2954
    %3081 = vmatpush2.bf16.msra.mxu0 %v2953
    %3082 = vmatprep.subr.bf16.mxu0 %v2952
    %3083 = vmatpush2.bf16.msra.mxu0 %v2951
    %3084 = vmatprep.subr.bf16.mxu0 %v2950
    %3085 = vmatpush2.bf16.msra.mxu0 %v2949
    %3086 = vmatprep.subr.bf16.mxu0 %v2948
    %3087 = vmatpush2.bf16.msra.mxu0 %v2947
    %3088 = vmatprep.subr.bf16.mxu0 %v2946
    %3089 = vmatpush2.bf16.msra.mxu0 %v2945
    %3090 = vmatprep.subr.bf16.mxu0 %v2944
    %3091 = vmatpush2.bf16.msra.mxu0 %v2943
    %3092 = vmatprep.subr.bf16.mxu0 %v2942
    %3093 = vmatpush2.bf16.msra.mxu0 %v2941
    %3094 = vmatprep.mubr.bf16.mxu0 %v2624
    %3095 = vmatmul.mubr.bf16.gmra.mxu0 %v2623
    %v3096 = vpop.f32.mrf.mxu0
    %v3097 = vadd.f32 %v3056, %v3096
    %v3098 = vpop.f32.mrf.mxu0
    %v3099 = vadd.f32 %v3058, %v3098
    %v3100 = vpop.f32.mrf.mxu0
    %v3101 = vpop.f32.mrf.mxu0
    %3102 = vdwg.mxu0
    %vm3103 = vcmp.ge.f32.partialorder %v3097, 0.0
    %vm3104 = vcmp.ge.f32.partialorder %v3099, 0.0
    %v3105 = vmul.f32 %v3097, 0.2
    %v3106 = vmul.f32 %v3099, 0.2
    %v3107 = vsel %vm3103, %v3097, %v3105
    %v3108 = vsel %vm3104, %v3099, %v3106
    %v3109 = vld [vmem:[%s7] sm:$0x3]
    %v3110 = vunpack.c.l.bf16 %v3109
    %v3112 = vlaneseq
    %v3113 = vshrl.u32 %v3112, 7
    %v3114 = vsub.s32 0, %v3113
    %v3115 = vrot.slane %v3110, %v3114
    %v3116 = vlaneseq
    %v3117 = vshrl.u32 %v3116, 7
    %v3118 = vsub.s32 2, %v3117
    %v3119 = vrot.slane %v3110, %v3118
    %v3122 = vlaneseq
    %v3123 = vshrl.u32 %v3122, 7
    %v3124 = vsub.s32 0, %v3123
    %v3125 = vrot.slane %v3115, %v3124
    %v3126 = vlaneseq
    %v3127 = vshrl.u32 %v3126, 7
    %v3128 = vsub.s32 0, %v3127
    %v3129 = vrot.slane %v3119, %v3128
    %v3130 = vmul.f32 %v3107, %v3125
    %v3131 = vmul.f32 %v3108, %v3129
    %v3132 = vadd.f32 %v3130, %v3131
    %3133 = vadd.xlane.f32.xlu0 %v3132
    %v3134 = vpop.xlane.xlu0 %3133
    %s3135 = sld [smem:[#allocation2]]
    %v3136 = vstv %s3135
    %v3137 = vadd.f32 %v3134, %v3136
    %v3138 = vsub.f32 0.0, %v3137
    %v3139 = vmul.f32 %v3138, 1.442695
    %v3140 = vpow.pop %v3139
    %v3141 = vadd.f32 %v3140, 1.0
    %v3142 = vrcp.pop %v3141
    %v3143 = vmul.f32 1.0, %v3142
    %v3145 = vlaneseq
    %v3146 = vand.u32 %v3145, 127
    %v3147 = vlaneseq
    %v3148 = vshrl.u32 %v3147, 7
    %v3149 = vsub.s32 %v3146, %v3148
    %v3150 = vrot.slane %v3143, %v3149
    %vm3152 = vcmask 57344
    %3153 = vst.msk [vmem:[#allocation12] sm:$0x1] %vm3152, %v3150
    // Predicated region
    $region58: #{tpu_custom_call.1} parent=1 // pred_check
      _
    $region59: #{tpu_custom_call.1} parent=1 // pred_check_branch
      %3155 = sbr.rel (0) target = $region61
    $region60: #{tpu_custom_call.1} parent=1 // pred_region
      %s3157 = ssub.s32 16, 16
      %3158 = vsyncadd [#allocation5], %s3157
      %s3160 = sshll.u32 [#allocation12], 4
      %s3161 = int_to_ptr.vmem [resolvable:$true] %s3160
      %3163 = dma.vmem_to_hbm [thread:$0]  %s3161, 16, %s9, [#allocation5]
    $region61: #{tpu_custom_call.1} parent=1 // pred_fallthru
      _
    // Predicated region
    $region62: #{tpu_custom_call.1} parent=1 // pred_check
      _
    $region63: #{tpu_custom_call.1} parent=1 // pred_check_branch
      %3165 = sbr.rel (0) target = $region65
    $region64: #{tpu_custom_call.1} parent=1 // pred_region
      %3166 = dma.done [#allocation5], 16
    $region65: #{tpu_custom_call.1} parent=1 // pred_fallthru
      _
    %3167 = vsyncpa [#allocation4], 1
    %3168 = vsyncpa [#allocation7], 1
    %3169 = vsyncpa [#allocation10], 1
    %3170 = vsyncpa [#allocation5], 1

</llo_original>
